<compile_context>
chip_gen: v6e
topology: v6e:2x2x1
jax: 0.10.0
libtpu: 0.0.40
codegen_flags: <defaults>
</compile_context>

<pallas_src>
import functools

import jax
import jax.numpy as jnp
from jax.experimental import pallas as pl
from jax.experimental.pallas import tpu as pltpu


IN_CH = 1536
H1 = 512
H2 = 256
OUT = 4
OUT_PAD = 128  # lane-dense final layer / output block


def _round_up(x, m):
    return ((x + m - 1) // m) * m


def mlp_kernel(x_ref, w1_ref, b1_ref, w2_ref, b2_ref, w3_ref, b3_ref, o_ref):
    # Cast the streamed f32 rows to bf16 in-kernel (hidden under MXU work).
    x_bf = x_ref[...].astype(jnp.bfloat16)
    # Layer 1: (tm, IN_CH) @ (IN_CH, H1) + b1, ReLU   (bf16 x bf16 -> f32 acc)
    h1 = jnp.dot(x_bf, w1_ref[...], preferred_element_type=jnp.float32)
    h1 = jnp.maximum(h1 + b1_ref[...], 0.0)
    # Layer 2: (tm, H1) @ (H1, H2) + b2, ReLU
    h2 = jnp.dot(h1.astype(jnp.bfloat16), w2_ref[...],
                 preferred_element_type=jnp.float32)
    h2 = jnp.maximum(h2 + b2_ref[...], 0.0)
    # Layer 3 (padded to 128 lanes): (tm, H2) @ (H2, OUT_PAD) + b3, Sigmoid
    logits = jnp.dot(h2.astype(jnp.bfloat16), w3_ref[...],
                     preferred_element_type=jnp.float32)
    logits = logits + b3_ref[...]
    o_ref[...] = jax.nn.sigmoid(logits).astype(o_ref.dtype)


def prepare_params(params):
    """One-time weight prep: bf16 cast + lane-dense padding of the final layer.

    Do this ONCE (outside the per-call path); every mlp_forward call then only
    streams x and launches the kernel.
    """
    w1, b1, w2, b2, w3, b3 = params
    w1_bf = w1.astype(jnp.bfloat16)
    w2_bf = w2.astype(jnp.bfloat16)
    w3_p = jnp.zeros((H2, OUT_PAD), jnp.bfloat16).at[:, :OUT].set(
        w3.astype(jnp.bfloat16))
    b3_p = jnp.zeros((1, OUT_PAD), jnp.float32).at[:, :OUT].set(
        b3.reshape(1, OUT).astype(jnp.float32))
    return (w1_bf,
            b1.reshape(1, H1).astype(jnp.float32),
            w2_bf,
            b2.reshape(1, H2).astype(jnp.float32),
            w3_p,
            b3_p)


def _choose_tm(batch):
    """Batch-adaptive row tile.

    - Small (serving) batches: round up to the 8-row sublane multiple so we
      don't burn MXU MACs / x-DMA on padding rows.
    - Medium batches: cap at 256 so the grid has >= 2 steps (v7x megacore:
      both TensorCores get work via the parallel batch axis).
    - Large batches: tm = 512 amortizes per-step overhead (~0.35 us) while
      staying inside v5e's 16 MiB scoped-VMEM default (f32 x tile 3 MiB x2 +
      resident bf16 weights + f32 temporaries ~= 13 MiB).
    """
    if batch <= 256:
        return max(8, _round_up(batch, 8))
    if batch <= 512:
        return 256
    return 512


def mlp_forward(x, prepared_params, *, tm=None):
    """x: (B, IN_CH) float32.  prepared_params: output of prepare_params().

    Returns (B, OUT) float32.
    """
    w1_bf, b1, w2_bf, b2, w3_p, b3_p = prepared_params
    B = x.shape[0]
    if tm is None:
        tm = _choose_tm(B)

    grid_m = pl.cdiv(B, tm)          # ragged last block handled by Pallas
    grid = (grid_m,)
    rows = grid_m * tm               # rows actually pushed through the MXU

    # Weights/biases: constant block index -> fetched once, resident in VMEM.
    const = lambda shape: pl.BlockSpec(shape, lambda i: tuple(0 for _ in shape))

    flops = 2 * rows * (IN_CH * H1 + H1 * H2 + H2 * OUT_PAD)
    bytes_accessed = (
        rows * IN_CH * 4                                 # streamed x (f32)
        + (IN_CH * H1 + H1 * H2 + H2 * OUT_PAD) * 2      # weights (bf16)
        + (H1 + H2 + OUT_PAD) * 4                        # biases (f32)
        + rows * OUT_PAD * 4                             # output (f32)
    )
    transcendentals = rows * OUT_PAD                     # sigmoid

    out_p = pl.pallas_call(
        mlp_kernel,
        out_shape=jax.ShapeDtypeStruct((B, OUT_PAD), jnp.float32),
        grid_spec=pltpu.PrefetchScalarGridSpec(
            num_scalar_prefetch=0,
            grid=grid,
            in_specs=[
                pl.BlockSpec((tm, IN_CH), lambda i: (i, 0)),
                const((IN_CH, H1)),
                const((1, H1)),
                const((H1, H2)),
                const((1, H2)),
                const((H2, OUT_PAD)),
                const((1, OUT_PAD)),
            ],
            out_specs=pl.BlockSpec((tm, OUT_PAD), lambda i: (i, 0)),
        ),
        compiler_params=pltpu.CompilerParams(
            dimension_semantics=("parallel",),
        ),
        cost_estimate=pl.CostEstimate(
            flops=flops,
            transcendentals=transcendentals,
            bytes_accessed=bytes_accessed,
        ),
    )(x, w1_bf, b1, w2_bf, b2, w3_p, b3_p)

    return out_p[:, :OUT]


def init_params(key):
    """Deterministic synthetic parameters (shapes match nn.Linear layers)."""
    ks = jax.random.split(key, 6)

    def lin(kw, kb, fan_in, fan_out):
        bound = 1.0 / jnp.sqrt(fan_in)
        w = jax.random.uniform(kw, (fan_in, fan_out), jnp.float32, -bound, bound)
        b = jax.random.uniform(kb, (1, fan_out), jnp.float32, -bound, bound)
        return w, b

    w1, b1 = lin(ks[0], ks[1], IN_CH, H1)
    w2, b2 = lin(ks[2], ks[3], H1, H2)
    w3, b3 = lin(ks[4], ks[5], H2, OUT)
    return (w1, b1, w2, b2, w3, b3)


def mlp_reference(x, params):
    w1, b1, w2, b2, w3, b3 = params
    h1 = jnp.maximum(x @ w1 + b1, 0.0)
    h2 = jnp.maximum(h1 @ w2 + b2, 0.0)
    return jax.nn.sigmoid(h2 @ w3 + b3)


if __name__ == "__main__":
    key = jax.random.PRNGKey(0)
    k_x, k_p = jax.random.split(key)

    B = 8  # small demo batch: tm adapts to 8 rows (no 256-row padding waste)
    x = jax.random.normal(k_x, (B, IN_CH), jnp.float32)
    params = init_params(k_p)

    # One-time weight prep (bf16 cast + lane padding), then the hot path only
    # streams x through the fused kernel.
    prepared = prepare_params(params)
    prepared = jax.tree_util.tree_map(jax.block_until_ready, prepared)

    fwd = jax.jit(mlp_forward)
    out = fwd(x, prepared)
    out = jax.block_until_ready(out)

    ref = mlp_reference(x, params)
    assert out.shape == (B, OUT)
    # bf16 matmul operands -> loosened tolerance vs the f32 reference.
    assert jnp.allclose(out, ref, atol=2e-2, rtol=2e-2), "mismatch vs reference"

    print("KERNEL_OK")
</pallas_src>

<mosaic_0001>
module attributes {stable_mosaic.version = 11 : i64} {
  func.func @mlp_kernel(%arg0: i32, %arg1: memref<8x1536xf32, #tpu.memory_space<vmem>>, %arg2: memref<1536x512xbf16, #tpu.memory_space<vmem>>, %arg3: memref<1x512xf32, #tpu.memory_space<vmem>>, %arg4: memref<512x256xbf16, #tpu.memory_space<vmem>>, %arg5: memref<1x256xf32, #tpu.memory_space<vmem>>, %arg6: memref<256x128xbf16, #tpu.memory_space<vmem>>, %arg7: memref<1x128xf32, #tpu.memory_space<vmem>>, %arg8: memref<8x128xf32, #tpu.memory_space<vmem>>) attributes {dimension_semantics = [#tpu.dimension_semantics<parallel>], iteration_bounds = array<i64: 1>, scalar_prefetch = 0 : i64, scratch_operands = 0 : i64, tpu.core_type = #tpu.core_type<tc>, window_params = [{transform_indices = @transform_0, window_bounds = array<i64: 8, 1536>}, {pipeline_mode = #tpu.pipeline_mode<synchronous>, transform_indices = @transform_1, window_bounds = array<i64: 1536, 512>}, {pipeline_mode = #tpu.pipeline_mode<synchronous>, transform_indices = @transform_2, window_bounds = array<i64: 1, 512>}, {pipeline_mode = #tpu.pipeline_mode<synchronous>, transform_indices = @transform_3, window_bounds = array<i64: 512, 256>}, {pipeline_mode = #tpu.pipeline_mode<synchronous>, transform_indices = @transform_4, window_bounds = array<i64: 1, 256>}, {pipeline_mode = #tpu.pipeline_mode<synchronous>, transform_indices = @transform_5, window_bounds = array<i64: 256, 128>}, {pipeline_mode = #tpu.pipeline_mode<synchronous>, transform_indices = @transform_6, window_bounds = array<i64: 1, 128>}, {transform_indices = @transform_7, window_bounds = array<i64: 8, 128>}]} {
    %c0 = arith.constant 0 : index
    %c0_0 = arith.constant 0 : index
    %0 = vector.load %arg1[%c0, %c0_0] : memref<8x1536xf32, #tpu.memory_space<vmem>>, vector<8x1536xf32>
    %1 = arith.truncf %0 : vector<8x1536xf32> to vector<8x1536xbf16>
    %c0_1 = arith.constant 0 : index
    %c0_2 = arith.constant 0 : index
    %2 = vector.load %arg2[%c0_1, %c0_2] : memref<1536x512xbf16, #tpu.memory_space<vmem>>, vector<1536x512xbf16>
    %cst = arith.constant dense<0.000000e+00> : vector<8x512xf32>
    %3 = tpu.matmul %1, %2, %cst {dimension_numbers = #tpu.dot_dimension_numbers<[1], [0], [0], [1], [0, 0, 1, 1], [], []>} : vector<8x1536xbf16>, vector<1536x512xbf16>, vector<8x512xf32> -> vector<8x512xf32>
    %c0_3 = arith.constant 0 : index
    %c0_4 = arith.constant 0 : index
    %4 = vector.load %arg3[%c0_3, %c0_4] : memref<1x512xf32, #tpu.memory_space<vmem>>, vector<1x512xf32>
    %5 = vector.broadcast %4 : vector<1x512xf32> to vector<8x512xf32>
    %6 = arith.addf %3, %5 : vector<8x512xf32>
    %cst_5 = arith.constant 0.000000e+00 : f32
    %7 = vector.broadcast %cst_5 : f32 to vector<8x512xf32>
    %8 = arith.maximumf %6, %7 : vector<8x512xf32>
    %9 = arith.truncf %8 : vector<8x512xf32> to vector<8x512xbf16>
    %c0_6 = arith.constant 0 : index
    %c0_7 = arith.constant 0 : index
    %10 = vector.load %arg4[%c0_6, %c0_7] : memref<512x256xbf16, #tpu.memory_space<vmem>>, vector<512x256xbf16>
    %cst_8 = arith.constant dense<0.000000e+00> : vector<8x256xf32>
    %11 = tpu.matmul %9, %10, %cst_8 {dimension_numbers = #tpu.dot_dimension_numbers<[1], [0], [0], [1], [0, 0, 1, 1], [], []>} : vector<8x512xbf16>, vector<512x256xbf16>, vector<8x256xf32> -> vector<8x256xf32>
    %c0_9 = arith.constant 0 : index
    %c0_10 = arith.constant 0 : index
    %12 = vector.load %arg5[%c0_9, %c0_10] : memref<1x256xf32, #tpu.memory_space<vmem>>, vector<1x256xf32>
    %13 = vector.broadcast %12 : vector<1x256xf32> to vector<8x256xf32>
    %14 = arith.addf %11, %13 : vector<8x256xf32>
    %cst_11 = arith.constant 0.000000e+00 : f32
    %15 = vector.broadcast %cst_11 : f32 to vector<8x256xf32>
    %16 = arith.maximumf %14, %15 : vector<8x256xf32>
    %17 = arith.truncf %16 : vector<8x256xf32> to vector<8x256xbf16>
    %c0_12 = arith.constant 0 : index
    %c0_13 = arith.constant 0 : index
    %18 = vector.load %arg6[%c0_12, %c0_13] : memref<256x128xbf16, #tpu.memory_space<vmem>>, vector<256x128xbf16>
    %cst_14 = arith.constant dense<0.000000e+00> : vector<8x128xf32>
    %19 = tpu.matmul %17, %18, %cst_14 {dimension_numbers = #tpu.dot_dimension_numbers<[1], [0], [0], [1], [0, 0, 1, 1], [], []>} : vector<8x256xbf16>, vector<256x128xbf16>, vector<8x128xf32> -> vector<8x128xf32>
    %c0_15 = arith.constant 0 : index
    %c0_16 = arith.constant 0 : index
    %20 = vector.load %arg7[%c0_15, %c0_16] : memref<1x128xf32, #tpu.memory_space<vmem>>, vector<1x128xf32>
    %21 = vector.broadcast %20 : vector<1x128xf32> to vector<8x128xf32>
    %22 = arith.addf %19, %21 : vector<8x128xf32>
    %23 = arith.negf %22 : vector<8x128xf32>
    %24 = math.exp %23 : vector<8x128xf32>
    %cst_17 = arith.constant 1.000000e+00 : f32
    %25 = vector.broadcast %cst_17 : f32 to vector<8x128xf32>
    %26 = arith.addf %25, %24 : vector<8x128xf32>
    %27 = arith.divf %25, %26 : vector<8x128xf32>
    %c0_18 = arith.constant 0 : index
    %c0_19 = arith.constant 0 : index
    %28 = vector.load %arg8[%c0_18, %c0_19] : memref<8x128xf32, #tpu.memory_space<vmem>>, vector<8x128xf32>
    tpu.vector_store %arg8[%c0_18, %c0_19], %27 {strides = array<i32>} : memref<8x128xf32, #tpu.memory_space<vmem>>, vector<8x128xf32>,
    return
  }
  func.func @transform_0(%arg0: i32) -> (i32, i32) {
    %c0_i32 = arith.constant 0 : i32
    %c0_i32_0 = arith.constant 0 : i32
    return %arg0, %c0_i32 : i32, i32
  }
  func.func @transform_1(%arg0: i32) -> (i32, i32) {
    %c0_i32 = arith.constant 0 : i32
    %c0_i32_0 = arith.constant 0 : i32
    %c0_i32_1 = arith.constant 0 : i32
    return %c0_i32, %c0_i32_0 : i32, i32
  }
  func.func @transform_2(%arg0: i32) -> (i32, i32) {
    %c0_i32 = arith.constant 0 : i32
    %c0_i32_0 = arith.constant 0 : i32
    %c0_i32_1 = arith.constant 0 : i32
    return %c0_i32, %c0_i32_0 : i32, i32
  }
  func.func @transform_3(%arg0: i32) -> (i32, i32) {
    %c0_i32 = arith.constant 0 : i32
    %c0_i32_0 = arith.constant 0 : i32
    %c0_i32_1 = arith.constant 0 : i32
    return %c0_i32, %c0_i32_0 : i32, i32
  }
  func.func @transform_4(%arg0: i32) -> (i32, i32) {
    %c0_i32 = arith.constant 0 : i32
    %c0_i32_0 = arith.constant 0 : i32
    %c0_i32_1 = arith.constant 0 : i32
    return %c0_i32, %c0_i32_0 : i32, i32
  }
  func.func @transform_5(%arg0: i32) -> (i32, i32) {
    %c0_i32 = arith.constant 0 : i32
    %c0_i32_0 = arith.constant 0 : i32
    %c0_i32_1 = arith.constant 0 : i32
    return %c0_i32, %c0_i32_0 : i32, i32
  }
  func.func @transform_6(%arg0: i32) -> (i32, i32) {
    %c0_i32 = arith.constant 0 : i32
    %c0_i32_0 = arith.constant 0 : i32
    %c0_i32_1 = arith.constant 0 : i32
    return %c0_i32, %c0_i32_0 : i32, i32
  }
  func.func @transform_7(%arg0: i32) -> (i32, i32) {
    %c0_i32 = arith.constant 0 : i32
    %c0_i32_0 = arith.constant 0 : i32
    return %arg0, %c0_i32 : i32, i32
  }
}

</mosaic_0001>

<llo_original>
// kernel: mlp_forward.1
$region0: #{mlp_forward.1}
  #allocation0 [shape = 'u32[]', space=smem, size = 0x4, offset = 0x4, fixed_abs, tag = 'smem constant byte address 0x4 - core index']
  #allocation1 [shape = 'u32[144,128]{1,0:T(1,128)}', space=vmem, size = 0x12000, scoped, tag = 'internal scratch']
  %s0 = inlined_call_operand.hbm [shape: f32[8,1536], index: 0, kind: input, shape index: {}]
  %s1 = inlined_call_operand.hbm [shape: bf16[1536,512], index: 1, kind: input, shape index: {}]
  %s2 = inlined_call_operand.hbm [shape: f32[1,512], index: 2, kind: input, shape index: {}]
  %s3 = inlined_call_operand.hbm [shape: bf16[512,256], index: 3, kind: input, shape index: {}]
  %s4 = inlined_call_operand.hbm [shape: f32[1,256], index: 4, kind: input, shape index: {}]
  %s5 = inlined_call_operand.hbm [shape: bf16[256,128], index: 5, kind: input, shape index: {}]
  %s6 = inlined_call_operand.hbm [shape: f32[1,128], index: 6, kind: input, shape index: {}]
  %s7 = inlined_call_operand.vmem [shape: f32[8,128], index: 7, kind: output, shape index: {}]
  %s8 = sld [smem:[#allocation0]]
  $region66: #{mlp_forward.1} parent=0
    _
  %s10 = ssub.s32 1, %s8
  %s11 = scalar_select 0, %s10, %s8
  $region1: #{mlp_forward.1} parent=0
    #allocation2 [shape = 'u8[49152]{0}', space=vmem, size = 0xc000, scoped, tag = 'input window, operand 0, single buffered']
    #allocation3 [shape = 's32[1]{0}', space=sflag, size = 0x4, scoped, tag = 'scoped memory for mlp_forward.1']
    #allocation4 [shape = 'u8[1572864]{0}', space=vmem, size = 0x180000, scoped, tag = 'input window, operand 1, single buffered']
    #allocation5 [shape = 's32[1]{0}', space=sflag, size = 0x4, scoped, tag = 'scoped memory for mlp_forward.1']
    #allocation6 [shape = 'u8[2048]{0}', space=vmem, size = 0x800, scoped, tag = 'input window, operand 2, single buffered']
    #allocation7 [shape = 'u8[262144]{0}', space=vmem, size = 0x40000, scoped, tag = 'input window, operand 3, single buffered']
    #allocation8 [shape = 's32[1]{0}', space=sflag, size = 0x4, scoped, tag = 'scoped memory for mlp_forward.1']
    #allocation9 [shape = 'u8[1024]{0}', space=vmem, size = 0x400, scoped, tag = 'input window, operand 4, single buffered']
    #allocation10 [shape = 'u8[65536]{0}', space=vmem, size = 0x10000, scoped, tag = 'input window, operand 5, single buffered']
    #allocation11 [shape = 's32[1]{0}', space=sflag, size = 0x4, scoped, tag = 'scoped memory for mlp_forward.1']
    #allocation12 [shape = 'u8[512]{0}', space=vmem, size = 0x400, scoped, tag = 'input window, operand 6, single buffered']
    %12 = vsyncpa [#allocation3], 0
    %13 = vsyncpa [#allocation5], 0
    %14 = vsyncpa [#allocation8], 0
    %15 = vsyncpa [#allocation11], 0
    // Predicated region
    $region2: #{mlp_forward.1} parent=1 // pred_check
      _
    $region3: #{mlp_forward.1} parent=1 // pred_check_branch
      %17 = sbr.rel (0) target = $region5
    $region4: #{mlp_forward.1} parent=1 // pred_region
      %s19 = ssub.s32 1536, 1536
      %20 = vsyncadd [#allocation3], %s19
      %s22 = sshll.u32 [#allocation2], 4
      %s23 = int_to_ptr.vmem [resolvable:$true] %s22
      %25 = dma.hbm_to_vmem [thread:$0]  %s0, 1536, %s23, [#allocation3]
    $region5: #{mlp_forward.1} parent=1 // pred_fallthru
      _
    // Predicated region
    $region6: #{mlp_forward.1} parent=1 // pred_check
      _
    $region7: #{mlp_forward.1} parent=1 // pred_check_branch
      %27 = sbr.rel (0) target = $region9
    $region8: #{mlp_forward.1} parent=1 // pred_region
      %s29 = ssub.s32 49152, 49152
      %30 = vsyncadd [#allocation5], %s29
      %s31 = sshll.u32 [#allocation4], 4
      %s32 = int_to_ptr.vmem [resolvable:$true] %s31
      %37 = dma.hbm_to_vmem [thread:$0]  %s1, 49152, %s32, [#allocation5], 256, 256, 16
    $region9: #{mlp_forward.1} parent=1 // pred_fallthru
      _
    // Predicated region
    $region10: #{mlp_forward.1} parent=1 // pred_check
      _
    $region11: #{mlp_forward.1} parent=1 // pred_check_branch
      %39 = sbr.rel (0) target = $region13
    $region12: #{mlp_forward.1} parent=1 // pred_region
      %s41 = ssub.s32 64, 64
      %42 = vsyncadd [#allocation5], %s41
      %s44 = sshll.u32 [#allocation6], 4
      %s45 = int_to_ptr.vmem [resolvable:$true] %s44
      %47 = dma.hbm_to_vmem [thread:$0]  %s2, 64, %s45, [#allocation5]
    $region13: #{mlp_forward.1} parent=1 // pred_fallthru
      _
    // Predicated region
    $region14: #{mlp_forward.1} parent=1 // pred_check
      _
    $region15: #{mlp_forward.1} parent=1 // pred_check_branch
      %49 = sbr.rel (0) target = $region17
    $region16: #{mlp_forward.1} parent=1 // pred_region
      %s51 = ssub.s32 8192, 8192
      %52 = vsyncadd [#allocation8], %s51
      %s53 = sshll.u32 [#allocation7], 4
      %s54 = int_to_ptr.vmem [resolvable:$true] %s53
      %59 = dma.hbm_to_vmem [thread:$0]  %s3, 8192, %s54, [#allocation8], 128, 128, 8
    $region17: #{mlp_forward.1} parent=1 // pred_fallthru
      _
    // Predicated region
    $region18: #{mlp_forward.1} parent=1 // pred_check
      _
    $region19: #{mlp_forward.1} parent=1 // pred_check_branch
      %61 = sbr.rel (0) target = $region21
    $region20: #{mlp_forward.1} parent=1 // pred_region
      %s63 = ssub.s32 32, 32
      %64 = vsyncadd [#allocation8], %s63
      %s66 = sshll.u32 [#allocation9], 4
      %s67 = int_to_ptr.vmem [resolvable:$true] %s66
      %69 = dma.hbm_to_vmem [thread:$0]  %s4, 32, %s67, [#allocation8]
    $region21: #{mlp_forward.1} parent=1 // pred_fallthru
      _
    // Predicated region
    $region22: #{mlp_forward.1} parent=1 // pred_check
      _
    $region23: #{mlp_forward.1} parent=1 // pred_check_branch
      %71 = sbr.rel (0) target = $region25
    $region24: #{mlp_forward.1} parent=1 // pred_region
      %s73 = ssub.s32 2048, 2048
      %74 = vsyncadd [#allocation11], %s73
      %s75 = sshll.u32 [#allocation10], 4
      %s76 = int_to_ptr.vmem [resolvable:$true] %s75
      %81 = dma.hbm_to_vmem [thread:$0]  %s5, 2048, %s76, [#allocation11], 64, 64, 4
    $region25: #{mlp_forward.1} parent=1 // pred_fallthru
      _
    // Predicated region
    $region26: #{mlp_forward.1} parent=1 // pred_check
      _
    $region27: #{mlp_forward.1} parent=1 // pred_check_branch
      %83 = sbr.rel (0) target = $region29
    $region28: #{mlp_forward.1} parent=1 // pred_region
      %s85 = ssub.s32 16, 16
      %86 = vsyncadd [#allocation11], %s85
      %s88 = sshll.u32 [#allocation12], 4
      %s89 = int_to_ptr.vmem [resolvable:$true] %s88
      %91 = dma.hbm_to_vmem [thread:$0]  %s6, 16, %s89, [#allocation11]
    $region29: #{mlp_forward.1} parent=1 // pred_fallthru
      _
    // Predicated region
    $region30: #{mlp_forward.1} parent=1 // pred_check
      _
    $region31: #{mlp_forward.1} parent=1 // pred_check_branch
      %93 = sbr.rel (0) target = $region33
    $region32: #{mlp_forward.1} parent=1 // pred_region
      %94 = dma.done [#allocation3], 1536
    $region33: #{mlp_forward.1} parent=1 // pred_fallthru
      _
    // Predicated region
    $region34: #{mlp_forward.1} parent=1 // pred_check
      _
    $region35: #{mlp_forward.1} parent=1 // pred_check_branch
      %96 = sbr.rel (0) target = $region37
    $region36: #{mlp_forward.1} parent=1 // pred_region
      %97 = dma.done [#allocation5], 49152
    $region37: #{mlp_forward.1} parent=1 // pred_fallthru
      _
    // Predicated region
    $region38: #{mlp_forward.1} parent=1 // pred_check
      _
    $region39: #{mlp_forward.1} parent=1 // pred_check_branch
      %99 = sbr.rel (0) target = $region41
    $region40: #{mlp_forward.1} parent=1 // pred_region
      %100 = dma.done [#allocation5], 64
    $region41: #{mlp_forward.1} parent=1 // pred_fallthru
      _
    // Predicated region
    $region42: #{mlp_forward.1} parent=1 // pred_check
      _
    $region43: #{mlp_forward.1} parent=1 // pred_check_branch
      %102 = sbr.rel (0) target = $region45
    $region44: #{mlp_forward.1} parent=1 // pred_region
      %103 = dma.done [#allocation8], 8192
    $region45: #{mlp_forward.1} parent=1 // pred_fallthru
      _
    // Predicated region
    $region46: #{mlp_forward.1} parent=1 // pred_check
      _
    $region47: #{mlp_forward.1} parent=1 // pred_check_branch
      %105 = sbr.rel (0) target = $region49
    $region48: #{mlp_forward.1} parent=1 // pred_region
      %106 = dma.done [#allocation8], 32
    $region49: #{mlp_forward.1} parent=1 // pred_fallthru
      _
    // Predicated region
    $region50: #{mlp_forward.1} parent=1 // pred_check
      _
    $region51: #{mlp_forward.1} parent=1 // pred_check_branch
      %108 = sbr.rel (0) target = $region53
    $region52: #{mlp_forward.1} parent=1 // pred_region
      %109 = dma.done [#allocation11], 2048
    $region53: #{mlp_forward.1} parent=1 // pred_fallthru
      _
    // Predicated region
    $region54: #{mlp_forward.1} parent=1 // pred_check
      _
    $region55: #{mlp_forward.1} parent=1 // pred_check_branch
      %111 = sbr.rel (0) target = $region57
    $region56: #{mlp_forward.1} parent=1 // pred_region
      %112 = dma.done [#allocation11], 16
    $region57: #{mlp_forward.1} parent=1 // pred_fallthru
      _
    %v114 = vld [vmem:[#allocation2] sm:$0xff]
    %v115 = vld [vmem:[#allocation2 + $0x8] sm:$0xff]
    %v116 = vld [vmem:[#allocation2 + $0x10] sm:$0xff]
    %v117 = vld [vmem:[#allocation2 + $0x18] sm:$0xff]
    %v118 = vld [vmem:[#allocation2 + $0x20] sm:$0xff]
    %v119 = vld [vmem:[#allocation2 + $0x28] sm:$0xff]
    %v120 = vld [vmem:[#allocation2 + $0x30] sm:$0xff]
    %v121 = vld [vmem:[#allocation2 + $0x38] sm:$0xff]
    %v122 = vld [vmem:[#allocation2 + $0x40] sm:$0xff]
    %v123 = vld [vmem:[#allocation2 + $0x48] sm:$0xff]
    %v124 = vld [vmem:[#allocation2 + $0x50] sm:$0xff]
    %v125 = vld [vmem:[#allocation2 + $0x58] sm:$0xff]
    %v126 = vpack.c.bf16 %v114, %v114
    %v127 = vpack.c.bf16 %v115, %v115
    %v128 = vpack.c.bf16 %v116, %v116
    %v129 = vpack.c.bf16 %v117, %v117
    %v130 = vpack.c.bf16 %v118, %v118
    %v131 = vpack.c.bf16 %v119, %v119
    %v132 = vpack.c.bf16 %v120, %v120
    %v133 = vpack.c.bf16 %v121, %v121
    %v134 = vpack.c.bf16 %v122, %v122
    %v135 = vpack.c.bf16 %v123, %v123
    %v136 = vpack.c.bf16 %v124, %v124
    %v137 = vpack.c.bf16 %v125, %v125
    %v138 = vld [vmem:[#allocation4] sm:$0xff]
    %v139 = vld [vmem:[#allocation4 + $0x8] sm:$0xff]
    %v140 = vld [vmem:[#allocation4 + $0x10] sm:$0xff]
    %v141 = vld [vmem:[#allocation4 + $0x18] sm:$0xff]
    %v142 = vld [vmem:[#allocation4 + $0x20] sm:$0xff]
    %v143 = vld [vmem:[#allocation4 + $0x28] sm:$0xff]
    %v144 = vld [vmem:[#allocation4 + $0x30] sm:$0xff]
    %v145 = vld [vmem:[#allocation4 + $0x38] sm:$0xff]
    %v146 = vld [vmem:[#allocation4 + $0x40] sm:$0xff]
    %v147 = vld [vmem:[#allocation4 + $0x48] sm:$0xff]
    %v148 = vld [vmem:[#allocation4 + $0x50] sm:$0xff]
    %v149 = vld [vmem:[#allocation4 + $0x58] sm:$0xff]
    %v150 = vld [vmem:[#allocation4 + $0x60] sm:$0xff]
    %v151 = vld [vmem:[#allocation4 + $0x68] sm:$0xff]
    %v152 = vld [vmem:[#allocation4 + $0x70] sm:$0xff]
    %v153 = vld [vmem:[#allocation4 + $0x78] sm:$0xff]
    %v154 = vld [vmem:[#allocation4 + $0x80] sm:$0xff]
    %v155 = vld [vmem:[#allocation4 + $0x88] sm:$0xff]
    %v156 = vld [vmem:[#allocation4 + $0x90] sm:$0xff]
    %v157 = vld [vmem:[#allocation4 + $0x98] sm:$0xff]
    %v158 = vld [vmem:[#allocation4 + $0xa0] sm:$0xff]
    %v159 = vld [vmem:[#allocation4 + $0xa8] sm:$0xff]
    %v160 = vld [vmem:[#allocation4 + $0xb0] sm:$0xff]
    %v161 = vld [vmem:[#allocation4 + $0xb8] sm:$0xff]
    %v162 = vld [vmem:[#allocation4 + $0xc0] sm:$0xff]
    %v163 = vld [vmem:[#allocation4 + $0xc8] sm:$0xff]
    %v164 = vld [vmem:[#allocation4 + $0xd0] sm:$0xff]
    %v165 = vld [vmem:[#allocation4 + $0xd8] sm:$0xff]
    %v166 = vld [vmem:[#allocation4 + $0xe0] sm:$0xff]
    %v167 = vld [vmem:[#allocation4 + $0xe8] sm:$0xff]
    %v168 = vld [vmem:[#allocation4 + $0xf0] sm:$0xff]
    %v169 = vld [vmem:[#allocation4 + $0xf8] sm:$0xff]
    %v170 = vld [vmem:[#allocation4 + $0x100] sm:$0xff]
    %v171 = vld [vmem:[#allocation4 + $0x108] sm:$0xff]
    %v172 = vld [vmem:[#allocation4 + $0x110] sm:$0xff]
    %v173 = vld [vmem:[#allocation4 + $0x118] sm:$0xff]
    %v174 = vld [vmem:[#allocation4 + $0x120] sm:$0xff]
    %v175 = vld [vmem:[#allocation4 + $0x128] sm:$0xff]
    %v176 = vld [vmem:[#allocation4 + $0x130] sm:$0xff]
    %v177 = vld [vmem:[#allocation4 + $0x138] sm:$0xff]
    %v178 = vld [vmem:[#allocation4 + $0x140] sm:$0xff]
    %v179 = vld [vmem:[#allocation4 + $0x148] sm:$0xff]
    %v180 = vld [vmem:[#allocation4 + $0x150] sm:$0xff]
    %v181 = vld [vmem:[#allocation4 + $0x158] sm:$0xff]
    %v182 = vld [vmem:[#allocation4 + $0x160] sm:$0xff]
    %v183 = vld [vmem:[#allocation4 + $0x168] sm:$0xff]
    %v184 = vld [vmem:[#allocation4 + $0x170] sm:$0xff]
    %v185 = vld [vmem:[#allocation4 + $0x178] sm:$0xff]
    %v186 = vld [vmem:[#allocation4 + $0x180] sm:$0xff]
    %v187 = vld [vmem:[#allocation4 + $0x188] sm:$0xff]
    %v188 = vld [vmem:[#allocation4 + $0x190] sm:$0xff]
    %v189 = vld [vmem:[#allocation4 + $0x198] sm:$0xff]
    %v190 = vld [vmem:[#allocation4 + $0x1a0] sm:$0xff]
    %v191 = vld [vmem:[#allocation4 + $0x1a8] sm:$0xff]
    %v192 = vld [vmem:[#allocation4 + $0x1b0] sm:$0xff]
    %v193 = vld [vmem:[#allocation4 + $0x1b8] sm:$0xff]
    %v194 = vld [vmem:[#allocation4 + $0x1c0] sm:$0xff]
    %v195 = vld [vmem:[#allocation4 + $0x1c8] sm:$0xff]
    %v196 = vld [vmem:[#allocation4 + $0x1d0] sm:$0xff]
    %v197 = vld [vmem:[#allocation4 + $0x1d8] sm:$0xff]
    %v198 = vld [vmem:[#allocation4 + $0x1e0] sm:$0xff]
    %v199 = vld [vmem:[#allocation4 + $0x1e8] sm:$0xff]
    %v200 = vld [vmem:[#allocation4 + $0x1f0] sm:$0xff]
    %v201 = vld [vmem:[#allocation4 + $0x1f8] sm:$0xff]
    %v202 = vld [vmem:[#allocation4 + $0x200] sm:$0xff]
    %v203 = vld [vmem:[#allocation4 + $0x208] sm:$0xff]
    %v204 = vld [vmem:[#allocation4 + $0x210] sm:$0xff]
    %v205 = vld [vmem:[#allocation4 + $0x218] sm:$0xff]
    %v206 = vld [vmem:[#allocation4 + $0x220] sm:$0xff]
    %v207 = vld [vmem:[#allocation4 + $0x228] sm:$0xff]
    %v208 = vld [vmem:[#allocation4 + $0x230] sm:$0xff]
    %v209 = vld [vmem:[#allocation4 + $0x238] sm:$0xff]
    %v210 = vld [vmem:[#allocation4 + $0x240] sm:$0xff]
    %v211 = vld [vmem:[#allocation4 + $0x248] sm:$0xff]
    %v212 = vld [vmem:[#allocation4 + $0x250] sm:$0xff]
    %v213 = vld [vmem:[#allocation4 + $0x258] sm:$0xff]
    %v214 = vld [vmem:[#allocation4 + $0x260] sm:$0xff]
    %v215 = vld [vmem:[#allocation4 + $0x268] sm:$0xff]
    %v216 = vld [vmem:[#allocation4 + $0x270] sm:$0xff]
    %v217 = vld [vmem:[#allocation4 + $0x278] sm:$0xff]
    %v218 = vld [vmem:[#allocation4 + $0x280] sm:$0xff]
    %v219 = vld [vmem:[#allocation4 + $0x288] sm:$0xff]
    %v220 = vld [vmem:[#allocation4 + $0x290] sm:$0xff]
    %v221 = vld [vmem:[#allocation4 + $0x298] sm:$0xff]
    %v222 = vld [vmem:[#allocation4 + $0x2a0] sm:$0xff]
    %v223 = vld [vmem:[#allocation4 + $0x2a8] sm:$0xff]
    %v224 = vld [vmem:[#allocation4 + $0x2b0] sm:$0xff]
    %v225 = vld [vmem:[#allocation4 + $0x2b8] sm:$0xff]
    %v226 = vld [vmem:[#allocation4 + $0x2c0] sm:$0xff]
    %v227 = vld [vmem:[#allocation4 + $0x2c8] sm:$0xff]
    %v228 = vld [vmem:[#allocation4 + $0x2d0] sm:$0xff]
    %v229 = vld [vmem:[#allocation4 + $0x2d8] sm:$0xff]
    %v230 = vld [vmem:[#allocation4 + $0x2e0] sm:$0xff]
    %v231 = vld [vmem:[#allocation4 + $0x2e8] sm:$0xff]
    %v232 = vld [vmem:[#allocation4 + $0x2f0] sm:$0xff]
    %v233 = vld [vmem:[#allocation4 + $0x2f8] sm:$0xff]
    %v234 = vld [vmem:[#allocation4 + $0x300] sm:$0xff]
    %v235 = vld [vmem:[#allocation4 + $0x308] sm:$0xff]
    %v236 = vld [vmem:[#allocation4 + $0x310] sm:$0xff]
    %v237 = vld [vmem:[#allocation4 + $0x318] sm:$0xff]
    %v238 = vld [vmem:[#allocation4 + $0x320] sm:$0xff]
    %v239 = vld [vmem:[#allocation4 + $0x328] sm:$0xff]
    %v240 = vld [vmem:[#allocation4 + $0x330] sm:$0xff]
    %v241 = vld [vmem:[#allocation4 + $0x338] sm:$0xff]
    %v242 = vld [vmem:[#allocation4 + $0x340] sm:$0xff]
    %v243 = vld [vmem:[#allocation4 + $0x348] sm:$0xff]
    %v244 = vld [vmem:[#allocation4 + $0x350] sm:$0xff]
    %v245 = vld [vmem:[#allocation4 + $0x358] sm:$0xff]
    %v246 = vld [vmem:[#allocation4 + $0x360] sm:$0xff]
    %v247 = vld [vmem:[#allocation4 + $0x368] sm:$0xff]
    %v248 = vld [vmem:[#allocation4 + $0x370] sm:$0xff]
    %v249 = vld [vmem:[#allocation4 + $0x378] sm:$0xff]
    %v250 = vld [vmem:[#allocation4 + $0x380] sm:$0xff]
    %v251 = vld [vmem:[#allocation4 + $0x388] sm:$0xff]
    %v252 = vld [vmem:[#allocation4 + $0x390] sm:$0xff]
    %v253 = vld [vmem:[#allocation4 + $0x398] sm:$0xff]
    %v254 = vld [vmem:[#allocation4 + $0x3a0] sm:$0xff]
    %v255 = vld [vmem:[#allocation4 + $0x3a8] sm:$0xff]
    %v256 = vld [vmem:[#allocation4 + $0x3b0] sm:$0xff]
    %v257 = vld [vmem:[#allocation4 + $0x3b8] sm:$0xff]
    %v258 = vld [vmem:[#allocation4 + $0x3c0] sm:$0xff]
    %v259 = vld [vmem:[#allocation4 + $0x3c8] sm:$0xff]
    %v260 = vld [vmem:[#allocation4 + $0x3d0] sm:$0xff]
    %v261 = vld [vmem:[#allocation4 + $0x3d8] sm:$0xff]
    %v262 = vld [vmem:[#allocation4 + $0x3e0] sm:$0xff]
    %v263 = vld [vmem:[#allocation4 + $0x3e8] sm:$0xff]
    %v264 = vld [vmem:[#allocation4 + $0x3f0] sm:$0xff]
    %v265 = vld [vmem:[#allocation4 + $0x3f8] sm:$0xff]
    %v266 = vld [vmem:[#allocation4 + $0x400] sm:$0xff]
    %v267 = vld [vmem:[#allocation4 + $0x408] sm:$0xff]
    %v268 = vld [vmem:[#allocation4 + $0x410] sm:$0xff]
    %v269 = vld [vmem:[#allocation4 + $0x418] sm:$0xff]
    %v270 = vld [vmem:[#allocation4 + $0x420] sm:$0xff]
    %v271 = vld [vmem:[#allocation4 + $0x428] sm:$0xff]
    %v272 = vld [vmem:[#allocation4 + $0x430] sm:$0xff]
    %v273 = vld [vmem:[#allocation4 + $0x438] sm:$0xff]
    %v274 = vld [vmem:[#allocation4 + $0x440] sm:$0xff]
    %v275 = vld [vmem:[#allocation4 + $0x448] sm:$0xff]
    %v276 = vld [vmem:[#allocation4 + $0x450] sm:$0xff]
    %v277 = vld [vmem:[#allocation4 + $0x458] sm:$0xff]
    %v278 = vld [vmem:[#allocation4 + $0x460] sm:$0xff]
    %v279 = vld [vmem:[#allocation4 + $0x468] sm:$0xff]
    %v280 = vld [vmem:[#allocation4 + $0x470] sm:$0xff]
    %v281 = vld [vmem:[#allocation4 + $0x478] sm:$0xff]
    %v282 = vld [vmem:[#allocation4 + $0x480] sm:$0xff]
    %v283 = vld [vmem:[#allocation4 + $0x488] sm:$0xff]
    %v284 = vld [vmem:[#allocation4 + $0x490] sm:$0xff]
    %v285 = vld [vmem:[#allocation4 + $0x498] sm:$0xff]
    %v286 = vld [vmem:[#allocation4 + $0x4a0] sm:$0xff]
    %v287 = vld [vmem:[#allocation4 + $0x4a8] sm:$0xff]
    %v288 = vld [vmem:[#allocation4 + $0x4b0] sm:$0xff]
    %v289 = vld [vmem:[#allocation4 + $0x4b8] sm:$0xff]
    %v290 = vld [vmem:[#allocation4 + $0x4c0] sm:$0xff]
    %v291 = vld [vmem:[#allocation4 + $0x4c8] sm:$0xff]
    %v292 = vld [vmem:[#allocation4 + $0x4d0] sm:$0xff]
    %v293 = vld [vmem:[#allocation4 + $0x4d8] sm:$0xff]
    %v294 = vld [vmem:[#allocation4 + $0x4e0] sm:$0xff]
    %v295 = vld [vmem:[#allocation4 + $0x4e8] sm:$0xff]
    %v296 = vld [vmem:[#allocation4 + $0x4f0] sm:$0xff]
    %v297 = vld [vmem:[#allocation4 + $0x4f8] sm:$0xff]
    %v298 = vld [vmem:[#allocation4 + $0x500] sm:$0xff]
    %v299 = vld [vmem:[#allocation4 + $0x508] sm:$0xff]
    %v300 = vld [vmem:[#allocation4 + $0x510] sm:$0xff]
    %v301 = vld [vmem:[#allocation4 + $0x518] sm:$0xff]
    %v302 = vld [vmem:[#allocation4 + $0x520] sm:$0xff]
    %v303 = vld [vmem:[#allocation4 + $0x528] sm:$0xff]
    %v304 = vld [vmem:[#allocation4 + $0x530] sm:$0xff]
    %v305 = vld [vmem:[#allocation4 + $0x538] sm:$0xff]
    %v306 = vld [vmem:[#allocation4 + $0x540] sm:$0xff]
    %v307 = vld [vmem:[#allocation4 + $0x548] sm:$0xff]
    %v308 = vld [vmem:[#allocation4 + $0x550] sm:$0xff]
    %v309 = vld [vmem:[#allocation4 + $0x558] sm:$0xff]
    %v310 = vld [vmem:[#allocation4 + $0x560] sm:$0xff]
    %v311 = vld [vmem:[#allocation4 + $0x568] sm:$0xff]
    %v312 = vld [vmem:[#allocation4 + $0x570] sm:$0xff]
    %v313 = vld [vmem:[#allocation4 + $0x578] sm:$0xff]
    %v314 = vld [vmem:[#allocation4 + $0x580] sm:$0xff]
    %v315 = vld [vmem:[#allocation4 + $0x588] sm:$0xff]
    %v316 = vld [vmem:[#allocation4 + $0x590] sm:$0xff]
    %v317 = vld [vmem:[#allocation4 + $0x598] sm:$0xff]
    %v318 = vld [vmem:[#allocation4 + $0x5a0] sm:$0xff]
    %v319 = vld [vmem:[#allocation4 + $0x5a8] sm:$0xff]
    %v320 = vld [vmem:[#allocation4 + $0x5b0] sm:$0xff]
    %v321 = vld [vmem:[#allocation4 + $0x5b8] sm:$0xff]
    %v322 = vld [vmem:[#allocation4 + $0x5c0] sm:$0xff]
    %v323 = vld [vmem:[#allocation4 + $0x5c8] sm:$0xff]
    %v324 = vld [vmem:[#allocation4 + $0x5d0] sm:$0xff]
    %v325 = vld [vmem:[#allocation4 + $0x5d8] sm:$0xff]
    %v326 = vld [vmem:[#allocation4 + $0x5e0] sm:$0xff]
    %v327 = vld [vmem:[#allocation4 + $0x5e8] sm:$0xff]
    %v328 = vld [vmem:[#allocation4 + $0x5f0] sm:$0xff]
    %v329 = vld [vmem:[#allocation4 + $0x5f8] sm:$0xff]
    %v330 = vld [vmem:[#allocation4 + $0x600] sm:$0xff]
    %v331 = vld [vmem:[#allocation4 + $0x608] sm:$0xff]
    %v332 = vld [vmem:[#allocation4 + $0x610] sm:$0xff]
    %v333 = vld [vmem:[#allocation4 + $0x618] sm:$0xff]
    %v334 = vld [vmem:[#allocation4 + $0x620] sm:$0xff]
    %v335 = vld [vmem:[#allocation4 + $0x628] sm:$0xff]
    %v336 = vld [vmem:[#allocation4 + $0x630] sm:$0xff]
    %v337 = vld [vmem:[#allocation4 + $0x638] sm:$0xff]
    %v338 = vld [vmem:[#allocation4 + $0x640] sm:$0xff]
    %v339 = vld [vmem:[#allocation4 + $0x648] sm:$0xff]
    %v340 = vld [vmem:[#allocation4 + $0x650] sm:$0xff]
    %v341 = vld [vmem:[#allocation4 + $0x658] sm:$0xff]
    %v342 = vld [vmem:[#allocation4 + $0x660] sm:$0xff]
    %v343 = vld [vmem:[#allocation4 + $0x668] sm:$0xff]
    %v344 = vld [vmem:[#allocation4 + $0x670] sm:$0xff]
    %v345 = vld [vmem:[#allocation4 + $0x678] sm:$0xff]
    %v346 = vld [vmem:[#allocation4 + $0x680] sm:$0xff]
    %v347 = vld [vmem:[#allocation4 + $0x688] sm:$0xff]
    %v348 = vld [vmem:[#allocation4 + $0x690] sm:$0xff]
    %v349 = vld [vmem:[#allocation4 + $0x698] sm:$0xff]
    %v350 = vld [vmem:[#allocation4 + $0x6a0] sm:$0xff]
    %v351 = vld [vmem:[#allocation4 + $0x6a8] sm:$0xff]
    %v352 = vld [vmem:[#allocation4 + $0x6b0] sm:$0xff]
    %v353 = vld [vmem:[#allocation4 + $0x6b8] sm:$0xff]
    %v354 = vld [vmem:[#allocation4 + $0x6c0] sm:$0xff]
    %v355 = vld [vmem:[#allocation4 + $0x6c8] sm:$0xff]
    %v356 = vld [vmem:[#allocation4 + $0x6d0] sm:$0xff]
    %v357 = vld [vmem:[#allocation4 + $0x6d8] sm:$0xff]
    %v358 = vld [vmem:[#allocation4 + $0x6e0] sm:$0xff]
    %v359 = vld [vmem:[#allocation4 + $0x6e8] sm:$0xff]
    %v360 = vld [vmem:[#allocation4 + $0x6f0] sm:$0xff]
    %v361 = vld [vmem:[#allocation4 + $0x6f8] sm:$0xff]
    %v362 = vld [vmem:[#allocation4 + $0x700] sm:$0xff]
    %v363 = vld [vmem:[#allocation4 + $0x708] sm:$0xff]
    %v364 = vld [vmem:[#allocation4 + $0x710] sm:$0xff]
    %v365 = vld [vmem:[#allocation4 + $0x718] sm:$0xff]
    %v366 = vld [vmem:[#allocation4 + $0x720] sm:$0xff]
    %v367 = vld [vmem:[#allocation4 + $0x728] sm:$0xff]
    %v368 = vld [vmem:[#allocation4 + $0x730] sm:$0xff]
    %v369 = vld [vmem:[#allocation4 + $0x738] sm:$0xff]
    %v370 = vld [vmem:[#allocation4 + $0x740] sm:$0xff]
    %v371 = vld [vmem:[#allocation4 + $0x748] sm:$0xff]
    %v372 = vld [vmem:[#allocation4 + $0x750] sm:$0xff]
    %v373 = vld [vmem:[#allocation4 + $0x758] sm:$0xff]
    %v374 = vld [vmem:[#allocation4 + $0x760] sm:$0xff]
    %v375 = vld [vmem:[#allocation4 + $0x768] sm:$0xff]
    %v376 = vld [vmem:[#allocation4 + $0x770] sm:$0xff]
    %v377 = vld [vmem:[#allocation4 + $0x778] sm:$0xff]
    %v378 = vld [vmem:[#allocation4 + $0x780] sm:$0xff]
    %v379 = vld [vmem:[#allocation4 + $0x788] sm:$0xff]
    %v380 = vld [vmem:[#allocation4 + $0x790] sm:$0xff]
    %v381 = vld [vmem:[#allocation4 + $0x798] sm:$0xff]
    %v382 = vld [vmem:[#allocation4 + $0x7a0] sm:$0xff]
    %v383 = vld [vmem:[#allocation4 + $0x7a8] sm:$0xff]
    %v384 = vld [vmem:[#allocation4 + $0x7b0] sm:$0xff]
    %v385 = vld [vmem:[#allocation4 + $0x7b8] sm:$0xff]
    %v386 = vld [vmem:[#allocation4 + $0x7c0] sm:$0xff]
    %v387 = vld [vmem:[#allocation4 + $0x7c8] sm:$0xff]
    %v388 = vld [vmem:[#allocation4 + $0x7d0] sm:$0xff]
    %v389 = vld [vmem:[#allocation4 + $0x7d8] sm:$0xff]
    %v390 = vld [vmem:[#allocation4 + $0x7e0] sm:$0xff]
    %v391 = vld [vmem:[#allocation4 + $0x7e8] sm:$0xff]
    %v392 = vld [vmem:[#allocation4 + $0x7f0] sm:$0xff]
    %v393 = vld [vmem:[#allocation4 + $0x7f8] sm:$0xff]
    %v394 = vld [vmem:[#allocation4 + $0x800] sm:$0xff]
    %v395 = vld [vmem:[#allocation4 + $0x808] sm:$0xff]
    %v396 = vld [vmem:[#allocation4 + $0x810] sm:$0xff]
    %v397 = vld [vmem:[#allocation4 + $0x818] sm:$0xff]
    %v398 = vld [vmem:[#allocation4 + $0x820] sm:$0xff]
    %v399 = vld [vmem:[#allocation4 + $0x828] sm:$0xff]
    %v400 = vld [vmem:[#allocation4 + $0x830] sm:$0xff]
    %v401 = vld [vmem:[#allocation4 + $0x838] sm:$0xff]
    %v402 = vld [vmem:[#allocation4 + $0x840] sm:$0xff]
    %v403 = vld [vmem:[#allocation4 + $0x848] sm:$0xff]
    %v404 = vld [vmem:[#allocation4 + $0x850] sm:$0xff]
    %v405 = vld [vmem:[#allocation4 + $0x858] sm:$0xff]
    %v406 = vld [vmem:[#allocation4 + $0x860] sm:$0xff]
    %v407 = vld [vmem:[#allocation4 + $0x868] sm:$0xff]
    %v408 = vld [vmem:[#allocation4 + $0x870] sm:$0xff]
    %v409 = vld [vmem:[#allocation4 + $0x878] sm:$0xff]
    %v410 = vld [vmem:[#allocation4 + $0x880] sm:$0xff]
    %v411 = vld [vmem:[#allocation4 + $0x888] sm:$0xff]
    %v412 = vld [vmem:[#allocation4 + $0x890] sm:$0xff]
    %v413 = vld [vmem:[#allocation4 + $0x898] sm:$0xff]
    %v414 = vld [vmem:[#allocation4 + $0x8a0] sm:$0xff]
    %v415 = vld [vmem:[#allocation4 + $0x8a8] sm:$0xff]
    %v416 = vld [vmem:[#allocation4 + $0x8b0] sm:$0xff]
    %v417 = vld [vmem:[#allocation4 + $0x8b8] sm:$0xff]
    %v418 = vld [vmem:[#allocation4 + $0x8c0] sm:$0xff]
    %v419 = vld [vmem:[#allocation4 + $0x8c8] sm:$0xff]
    %v420 = vld [vmem:[#allocation4 + $0x8d0] sm:$0xff]
    %v421 = vld [vmem:[#allocation4 + $0x8d8] sm:$0xff]
    %v422 = vld [vmem:[#allocation4 + $0x8e0] sm:$0xff]
    %v423 = vld [vmem:[#allocation4 + $0x8e8] sm:$0xff]
    %v424 = vld [vmem:[#allocation4 + $0x8f0] sm:$0xff]
    %v425 = vld [vmem:[#allocation4 + $0x8f8] sm:$0xff]
    %v426 = vld [vmem:[#allocation4 + $0x900] sm:$0xff]
    %v427 = vld [vmem:[#allocation4 + $0x908] sm:$0xff]
    %v428 = vld [vmem:[#allocation4 + $0x910] sm:$0xff]
    %v429 = vld [vmem:[#allocation4 + $0x918] sm:$0xff]
    %v430 = vld [vmem:[#allocation4 + $0x920] sm:$0xff]
    %v431 = vld [vmem:[#allocation4 + $0x928] sm:$0xff]
    %v432 = vld [vmem:[#allocation4 + $0x930] sm:$0xff]
    %v433 = vld [vmem:[#allocation4 + $0x938] sm:$0xff]
    %v434 = vld [vmem:[#allocation4 + $0x940] sm:$0xff]
    %v435 = vld [vmem:[#allocation4 + $0x948] sm:$0xff]
    %v436 = vld [vmem:[#allocation4 + $0x950] sm:$0xff]
    %v437 = vld [vmem:[#allocation4 + $0x958] sm:$0xff]
    %v438 = vld [vmem:[#allocation4 + $0x960] sm:$0xff]
    %v439 = vld [vmem:[#allocation4 + $0x968] sm:$0xff]
    %v440 = vld [vmem:[#allocation4 + $0x970] sm:$0xff]
    %v441 = vld [vmem:[#allocation4 + $0x978] sm:$0xff]
    %v442 = vld [vmem:[#allocation4 + $0x980] sm:$0xff]
    %v443 = vld [vmem:[#allocation4 + $0x988] sm:$0xff]
    %v444 = vld [vmem:[#allocation4 + $0x990] sm:$0xff]
    %v445 = vld [vmem:[#allocation4 + $0x998] sm:$0xff]
    %v446 = vld [vmem:[#allocation4 + $0x9a0] sm:$0xff]
    %v447 = vld [vmem:[#allocation4 + $0x9a8] sm:$0xff]
    %v448 = vld [vmem:[#allocation4 + $0x9b0] sm:$0xff]
    %v449 = vld [vmem:[#allocation4 + $0x9b8] sm:$0xff]
    %v450 = vld [vmem:[#allocation4 + $0x9c0] sm:$0xff]
    %v451 = vld [vmem:[#allocation4 + $0x9c8] sm:$0xff]
    %v452 = vld [vmem:[#allocation4 + $0x9d0] sm:$0xff]
    %v453 = vld [vmem:[#allocation4 + $0x9d8] sm:$0xff]
    %v454 = vld [vmem:[#allocation4 + $0x9e0] sm:$0xff]
    %v455 = vld [vmem:[#allocation4 + $0x9e8] sm:$0xff]
    %v456 = vld [vmem:[#allocation4 + $0x9f0] sm:$0xff]
    %v457 = vld [vmem:[#allocation4 + $0x9f8] sm:$0xff]
    %v458 = vld [vmem:[#allocation4 + $0xa00] sm:$0xff]
    %v459 = vld [vmem:[#allocation4 + $0xa08] sm:$0xff]
    %v460 = vld [vmem:[#allocation4 + $0xa10] sm:$0xff]
    %v461 = vld [vmem:[#allocation4 + $0xa18] sm:$0xff]
    %v462 = vld [vmem:[#allocation4 + $0xa20] sm:$0xff]
    %v463 = vld [vmem:[#allocation4 + $0xa28] sm:$0xff]
    %v464 = vld [vmem:[#allocation4 + $0xa30] sm:$0xff]
    %v465 = vld [vmem:[#allocation4 + $0xa38] sm:$0xff]
    %v466 = vld [vmem:[#allocation4 + $0xa40] sm:$0xff]
    %v467 = vld [vmem:[#allocation4 + $0xa48] sm:$0xff]
    %v468 = vld [vmem:[#allocation4 + $0xa50] sm:$0xff]
    %v469 = vld [vmem:[#allocation4 + $0xa58] sm:$0xff]
    %v470 = vld [vmem:[#allocation4 + $0xa60] sm:$0xff]
    %v471 = vld [vmem:[#allocation4 + $0xa68] sm:$0xff]
    %v472 = vld [vmem:[#allocation4 + $0xa70] sm:$0xff]
    %v473 = vld [vmem:[#allocation4 + $0xa78] sm:$0xff]
    %v474 = vld [vmem:[#allocation4 + $0xa80] sm:$0xff]
    %v475 = vld [vmem:[#allocation4 + $0xa88] sm:$0xff]
    %v476 = vld [vmem:[#allocation4 + $0xa90] sm:$0xff]
    %v477 = vld [vmem:[#allocation4 + $0xa98] sm:$0xff]
    %v478 = vld [vmem:[#allocation4 + $0xaa0] sm:$0xff]
    %v479 = vld [vmem:[#allocation4 + $0xaa8] sm:$0xff]
    %v480 = vld [vmem:[#allocation4 + $0xab0] sm:$0xff]
    %v481 = vld [vmem:[#allocation4 + $0xab8] sm:$0xff]
    %v482 = vld [vmem:[#allocation4 + $0xac0] sm:$0xff]
    %v483 = vld [vmem:[#allocation4 + $0xac8] sm:$0xff]
    %v484 = vld [vmem:[#allocation4 + $0xad0] sm:$0xff]
    %v485 = vld [vmem:[#allocation4 + $0xad8] sm:$0xff]
    %v486 = vld [vmem:[#allocation4 + $0xae0] sm:$0xff]
    %v487 = vld [vmem:[#allocation4 + $0xae8] sm:$0xff]
    %v488 = vld [vmem:[#allocation4 + $0xaf0] sm:$0xff]
    %v489 = vld [vmem:[#allocation4 + $0xaf8] sm:$0xff]
    %v490 = vld [vmem:[#allocation4 + $0xb00] sm:$0xff]
    %v491 = vld [vmem:[#allocation4 + $0xb08] sm:$0xff]
    %v492 = vld [vmem:[#allocation4 + $0xb10] sm:$0xff]
    %v493 = vld [vmem:[#allocation4 + $0xb18] sm:$0xff]
    %v494 = vld [vmem:[#allocation4 + $0xb20] sm:$0xff]
    %v495 = vld [vmem:[#allocation4 + $0xb28] sm:$0xff]
    %v496 = vld [vmem:[#allocation4 + $0xb30] sm:$0xff]
    %v497 = vld [vmem:[#allocation4 + $0xb38] sm:$0xff]
    %v498 = vld [vmem:[#allocation4 + $0xb40] sm:$0xff]
    %v499 = vld [vmem:[#allocation4 + $0xb48] sm:$0xff]
    %v500 = vld [vmem:[#allocation4 + $0xb50] sm:$0xff]
    %v501 = vld [vmem:[#allocation4 + $0xb58] sm:$0xff]
    %v502 = vld [vmem:[#allocation4 + $0xb60] sm:$0xff]
    %v503 = vld [vmem:[#allocation4 + $0xb68] sm:$0xff]
    %v504 = vld [vmem:[#allocation4 + $0xb70] sm:$0xff]
    %v505 = vld [vmem:[#allocation4 + $0xb78] sm:$0xff]
    %v506 = vld [vmem:[#allocation4 + $0xb80] sm:$0xff]
    %v507 = vld [vmem:[#allocation4 + $0xb88] sm:$0xff]
    %v508 = vld [vmem:[#allocation4 + $0xb90] sm:$0xff]
    %v509 = vld [vmem:[#allocation4 + $0xb98] sm:$0xff]
    %v510 = vld [vmem:[#allocation4 + $0xba0] sm:$0xff]
    %v511 = vld [vmem:[#allocation4 + $0xba8] sm:$0xff]
    %v512 = vld [vmem:[#allocation4 + $0xbb0] sm:$0xff]
    %v513 = vld [vmem:[#allocation4 + $0xbb8] sm:$0xff]
    %v514 = vld [vmem:[#allocation4 + $0xbc0] sm:$0xff]
    %v515 = vld [vmem:[#allocation4 + $0xbc8] sm:$0xff]
    %v516 = vld [vmem:[#allocation4 + $0xbd0] sm:$0xff]
    %v517 = vld [vmem:[#allocation4 + $0xbd8] sm:$0xff]
    %v518 = vld [vmem:[#allocation4 + $0xbe0] sm:$0xff]
    %v519 = vld [vmem:[#allocation4 + $0xbe8] sm:$0xff]
    %v520 = vld [vmem:[#allocation4 + $0xbf0] sm:$0xff]
    %v521 = vld [vmem:[#allocation4 + $0xbf8] sm:$0xff]
    %v522 = vld [vmem:[#allocation6] sm:$0xf]
    %v524 = vlaneseq
    %v525 = vshrl.u32 %v524, 7
    %v526 = vsub.s32 0, %v525
    %v527 = vrot.slane %v522, %v526
    %v528 = vlaneseq
    %v529 = vshrl.u32 %v528, 7
    %v530 = vsub.s32 1, %v529
    %v531 = vrot.slane %v522, %v530
    %v532 = vlaneseq
    %v533 = vshrl.u32 %v532, 7
    %v534 = vsub.s32 2, %v533
    %v535 = vrot.slane %v522, %v534
    %v536 = vlaneseq
    %v537 = vshrl.u32 %v536, 7
    %v538 = vsub.s32 3, %v537
    %v539 = vrot.slane %v522, %v538
    %v928 = vunpack.c.l.b16 %v138
    %v929 = vunpack.c.h.b16 %v138
    %v930 = vunpack.c.l.b16 %v139
    %v931 = vunpack.c.h.b16 %v139
    %v932 = vunpack.c.l.b16 %v140
    %v933 = vunpack.c.h.b16 %v140
    %v934 = vunpack.c.l.b16 %v141
    %v935 = vunpack.c.h.b16 %v141
    %v936 = vunpack.c.l.b16 %v142
    %v937 = vunpack.c.h.b16 %v142
    %v938 = vunpack.c.l.b16 %v143
    %v939 = vunpack.c.h.b16 %v143
    %v940 = vunpack.c.l.b16 %v144
    %v941 = vunpack.c.h.b16 %v144
    %v942 = vunpack.c.l.b16 %v145
    %v943 = vunpack.c.h.b16 %v145
    %v944 = vunpack.c.l.b16 %v146
    %v945 = vunpack.c.h.b16 %v146
    %v946 = vunpack.c.l.b16 %v147
    %v947 = vunpack.c.h.b16 %v147
    %v948 = vunpack.c.l.b16 %v148
    %v949 = vunpack.c.h.b16 %v148
    %v950 = vunpack.c.l.b16 %v149
    %v951 = vunpack.c.h.b16 %v149
    %v952 = vunpack.c.l.b16 %v150
    %v953 = vunpack.c.h.b16 %v150
    %v954 = vunpack.c.l.b16 %v151
    %v955 = vunpack.c.h.b16 %v151
    %v956 = vunpack.c.l.b16 %v152
    %v957 = vunpack.c.h.b16 %v152
    %v958 = vunpack.c.l.b16 %v153
    %v959 = vunpack.c.h.b16 %v153
    %v960 = vunpack.c.l.b16 %v154
    %v961 = vunpack.c.h.b16 %v154
    %v962 = vunpack.c.l.b16 %v155
    %v963 = vunpack.c.h.b16 %v155
    %v964 = vunpack.c.l.b16 %v156
    %v965 = vunpack.c.h.b16 %v156
    %v966 = vunpack.c.l.b16 %v157
    %v967 = vunpack.c.h.b16 %v157
    %v968 = vunpack.c.l.b16 %v158
    %v969 = vunpack.c.h.b16 %v158
    %v970 = vunpack.c.l.b16 %v159
    %v971 = vunpack.c.h.b16 %v159
    %v972 = vunpack.c.l.b16 %v160
    %v973 = vunpack.c.h.b16 %v160
    %v974 = vunpack.c.l.b16 %v161
    %v975 = vunpack.c.h.b16 %v161
    %v976 = vunpack.c.l.b16 %v162
    %v977 = vunpack.c.h.b16 %v162
    %v978 = vunpack.c.l.b16 %v163
    %v979 = vunpack.c.h.b16 %v163
    %v980 = vunpack.c.l.b16 %v164
    %v981 = vunpack.c.h.b16 %v164
    %v982 = vunpack.c.l.b16 %v165
    %v983 = vunpack.c.h.b16 %v165
    %v984 = vunpack.c.l.b16 %v166
    %v985 = vunpack.c.h.b16 %v166
    %v986 = vunpack.c.l.b16 %v167
    %v987 = vunpack.c.h.b16 %v167
    %v988 = vunpack.c.l.b16 %v168
    %v989 = vunpack.c.h.b16 %v168
    %v990 = vunpack.c.l.b16 %v169
    %v991 = vunpack.c.h.b16 %v169
    %v992 = vunpack.c.l.b16 %v170
    %v993 = vunpack.c.h.b16 %v170
    %v994 = vunpack.c.l.b16 %v171
    %v995 = vunpack.c.h.b16 %v171
    %v996 = vunpack.c.l.b16 %v172
    %v997 = vunpack.c.h.b16 %v172
    %v998 = vunpack.c.l.b16 %v173
    %v999 = vunpack.c.h.b16 %v173
    %v1000 = vunpack.c.l.b16 %v174
    %v1001 = vunpack.c.h.b16 %v174
    %v1002 = vunpack.c.l.b16 %v175
    %v1003 = vunpack.c.h.b16 %v175
    %v1004 = vunpack.c.l.b16 %v176
    %v1005 = vunpack.c.h.b16 %v176
    %v1006 = vunpack.c.l.b16 %v177
    %v1007 = vunpack.c.h.b16 %v177
    %v1008 = vunpack.c.l.b16 %v178
    %v1009 = vunpack.c.h.b16 %v178
    %v1010 = vunpack.c.l.b16 %v179
    %v1011 = vunpack.c.h.b16 %v179
    %v1012 = vunpack.c.l.b16 %v180
    %v1013 = vunpack.c.h.b16 %v180
    %v1014 = vunpack.c.l.b16 %v181
    %v1015 = vunpack.c.h.b16 %v181
    %v1016 = vunpack.c.l.b16 %v182
    %v1017 = vunpack.c.h.b16 %v182
    %v1018 = vunpack.c.l.b16 %v183
    %v1019 = vunpack.c.h.b16 %v183
    %v1020 = vunpack.c.l.b16 %v184
    %v1021 = vunpack.c.h.b16 %v184
    %v1022 = vunpack.c.l.b16 %v185
    %v1023 = vunpack.c.h.b16 %v185
    %v1024 = vunpack.c.l.b16 %v186
    %v1025 = vunpack.c.h.b16 %v186
    %v1026 = vunpack.c.l.b16 %v187
    %v1027 = vunpack.c.h.b16 %v187
    %v1028 = vunpack.c.l.b16 %v188
    %v1029 = vunpack.c.h.b16 %v188
    %v1030 = vunpack.c.l.b16 %v189
    %v1031 = vunpack.c.h.b16 %v189
    %v1032 = vunpack.c.l.b16 %v190
    %v1033 = vunpack.c.h.b16 %v190
    %v1034 = vunpack.c.l.b16 %v191
    %v1035 = vunpack.c.h.b16 %v191
    %v1036 = vunpack.c.l.b16 %v192
    %v1037 = vunpack.c.h.b16 %v192
    %v1038 = vunpack.c.l.b16 %v193
    %v1039 = vunpack.c.h.b16 %v193
    %v1040 = vunpack.c.l.b16 %v194
    %v1041 = vunpack.c.h.b16 %v194
    %v1042 = vunpack.c.l.b16 %v195
    %v1043 = vunpack.c.h.b16 %v195
    %v1044 = vunpack.c.l.b16 %v196
    %v1045 = vunpack.c.h.b16 %v196
    %v1046 = vunpack.c.l.b16 %v197
    %v1047 = vunpack.c.h.b16 %v197
    %v1048 = vunpack.c.l.b16 %v198
    %v1049 = vunpack.c.h.b16 %v198
    %v1050 = vunpack.c.l.b16 %v199
    %v1051 = vunpack.c.h.b16 %v199
    %v1052 = vunpack.c.l.b16 %v200
    %v1053 = vunpack.c.h.b16 %v200
    %v1054 = vunpack.c.l.b16 %v201
    %v1055 = vunpack.c.h.b16 %v201
    %v1056 = vunpack.c.l.b16 %v202
    %v1057 = vunpack.c.h.b16 %v202
    %v1058 = vunpack.c.l.b16 %v203
    %v1059 = vunpack.c.h.b16 %v203
    %v1060 = vunpack.c.l.b16 %v204
    %v1061 = vunpack.c.h.b16 %v204
    %v1062 = vunpack.c.l.b16 %v205
    %v1063 = vunpack.c.h.b16 %v205
    %v1064 = vunpack.c.l.b16 %v206
    %v1065 = vunpack.c.h.b16 %v206
    %v1066 = vunpack.c.l.b16 %v207
    %v1067 = vunpack.c.h.b16 %v207
    %v1068 = vunpack.c.l.b16 %v208
    %v1069 = vunpack.c.h.b16 %v208
    %v1070 = vunpack.c.l.b16 %v209
    %v1071 = vunpack.c.h.b16 %v209
    %v1072 = vunpack.c.l.b16 %v210
    %v1073 = vunpack.c.h.b16 %v210
    %v1074 = vunpack.c.l.b16 %v211
    %v1075 = vunpack.c.h.b16 %v211
    %v1076 = vunpack.c.l.b16 %v212
    %v1077 = vunpack.c.h.b16 %v212
    %v1078 = vunpack.c.l.b16 %v213
    %v1079 = vunpack.c.h.b16 %v213
    %v1080 = vunpack.c.l.b16 %v214
    %v1081 = vunpack.c.h.b16 %v214
    %v1082 = vunpack.c.l.b16 %v215
    %v1083 = vunpack.c.h.b16 %v215
    %v1084 = vunpack.c.l.b16 %v216
    %v1085 = vunpack.c.h.b16 %v216
    %v1086 = vunpack.c.l.b16 %v217
    %v1087 = vunpack.c.h.b16 %v217
    %v1088 = vunpack.c.l.b16 %v218
    %v1089 = vunpack.c.h.b16 %v218
    %v1090 = vunpack.c.l.b16 %v219
    %v1091 = vunpack.c.h.b16 %v219
    %v1092 = vunpack.c.l.b16 %v220
    %v1093 = vunpack.c.h.b16 %v220
    %v1094 = vunpack.c.l.b16 %v221
    %v1095 = vunpack.c.h.b16 %v221
    %v1096 = vunpack.c.l.b16 %v222
    %v1097 = vunpack.c.h.b16 %v222
    %v1098 = vunpack.c.l.b16 %v223
    %v1099 = vunpack.c.h.b16 %v223
    %v1100 = vunpack.c.l.b16 %v224
    %v1101 = vunpack.c.h.b16 %v224
    %v1102 = vunpack.c.l.b16 %v225
    %v1103 = vunpack.c.h.b16 %v225
    %v1104 = vunpack.c.l.b16 %v226
    %v1105 = vunpack.c.h.b16 %v226
    %v1106 = vunpack.c.l.b16 %v227
    %v1107 = vunpack.c.h.b16 %v227
    %v1108 = vunpack.c.l.b16 %v228
    %v1109 = vunpack.c.h.b16 %v228
    %v1110 = vunpack.c.l.b16 %v229
    %v1111 = vunpack.c.h.b16 %v229
    %v1112 = vunpack.c.l.b16 %v230
    %v1113 = vunpack.c.h.b16 %v230
    %v1114 = vunpack.c.l.b16 %v231
    %v1115 = vunpack.c.h.b16 %v231
    %v1116 = vunpack.c.l.b16 %v232
    %v1117 = vunpack.c.h.b16 %v232
    %v1118 = vunpack.c.l.b16 %v233
    %v1119 = vunpack.c.h.b16 %v233
    %v1120 = vunpack.c.l.b16 %v234
    %v1121 = vunpack.c.h.b16 %v234
    %v1122 = vunpack.c.l.b16 %v235
    %v1123 = vunpack.c.h.b16 %v235
    %v1124 = vunpack.c.l.b16 %v236
    %v1125 = vunpack.c.h.b16 %v236
    %v1126 = vunpack.c.l.b16 %v237
    %v1127 = vunpack.c.h.b16 %v237
    %v1128 = vunpack.c.l.b16 %v238
    %v1129 = vunpack.c.h.b16 %v238
    %v1130 = vunpack.c.l.b16 %v239
    %v1131 = vunpack.c.h.b16 %v239
    %v1132 = vunpack.c.l.b16 %v240
    %v1133 = vunpack.c.h.b16 %v240
    %v1134 = vunpack.c.l.b16 %v241
    %v1135 = vunpack.c.h.b16 %v241
    %v1136 = vunpack.c.l.b16 %v242
    %v1137 = vunpack.c.h.b16 %v242
    %v1138 = vunpack.c.l.b16 %v243
    %v1139 = vunpack.c.h.b16 %v243
    %v1140 = vunpack.c.l.b16 %v244
    %v1141 = vunpack.c.h.b16 %v244
    %v1142 = vunpack.c.l.b16 %v245
    %v1143 = vunpack.c.h.b16 %v245
    %v1144 = vunpack.c.l.b16 %v246
    %v1145 = vunpack.c.h.b16 %v246
    %v1146 = vunpack.c.l.b16 %v247
    %v1147 = vunpack.c.h.b16 %v247
    %v1148 = vunpack.c.l.b16 %v248
    %v1149 = vunpack.c.h.b16 %v248
    %v1150 = vunpack.c.l.b16 %v249
    %v1151 = vunpack.c.h.b16 %v249
    %v1152 = vunpack.c.l.b16 %v250
    %v1153 = vunpack.c.h.b16 %v250
    %v1154 = vunpack.c.l.b16 %v251
    %v1155 = vunpack.c.h.b16 %v251
    %v1156 = vunpack.c.l.b16 %v252
    %v1157 = vunpack.c.h.b16 %v252
    %v1158 = vunpack.c.l.b16 %v253
    %v1159 = vunpack.c.h.b16 %v253
    %v1160 = vunpack.c.l.b16 %v254
    %v1161 = vunpack.c.h.b16 %v254
    %v1162 = vunpack.c.l.b16 %v255
    %v1163 = vunpack.c.h.b16 %v255
    %v1164 = vunpack.c.l.b16 %v256
    %v1165 = vunpack.c.h.b16 %v256
    %v1166 = vunpack.c.l.b16 %v257
    %v1167 = vunpack.c.h.b16 %v257
    %v1168 = vunpack.c.l.b16 %v258
    %v1169 = vunpack.c.h.b16 %v258
    %v1170 = vunpack.c.l.b16 %v259
    %v1171 = vunpack.c.h.b16 %v259
    %v1172 = vunpack.c.l.b16 %v260
    %v1173 = vunpack.c.h.b16 %v260
    %v1174 = vunpack.c.l.b16 %v261
    %v1175 = vunpack.c.h.b16 %v261
    %v1176 = vunpack.c.l.b16 %v262
    %v1177 = vunpack.c.h.b16 %v262
    %v1178 = vunpack.c.l.b16 %v263
    %v1179 = vunpack.c.h.b16 %v263
    %v1180 = vunpack.c.l.b16 %v264
    %v1181 = vunpack.c.h.b16 %v264
    %v1182 = vunpack.c.l.b16 %v265
    %v1183 = vunpack.c.h.b16 %v265
    %v1184 = vunpack.c.l.b16 %v266
    %v1185 = vunpack.c.h.b16 %v266
    %v1186 = vunpack.c.l.b16 %v267
    %v1187 = vunpack.c.h.b16 %v267
    %v1188 = vunpack.c.l.b16 %v268
    %v1189 = vunpack.c.h.b16 %v268
    %v1190 = vunpack.c.l.b16 %v269
    %v1191 = vunpack.c.h.b16 %v269
    %v1192 = vunpack.c.l.b16 %v270
    %v1193 = vunpack.c.h.b16 %v270
    %v1194 = vunpack.c.l.b16 %v271
    %v1195 = vunpack.c.h.b16 %v271
    %v1196 = vunpack.c.l.b16 %v272
    %v1197 = vunpack.c.h.b16 %v272
    %v1198 = vunpack.c.l.b16 %v273
    %v1199 = vunpack.c.h.b16 %v273
    %v1200 = vunpack.c.l.b16 %v274
    %v1201 = vunpack.c.h.b16 %v274
    %v1202 = vunpack.c.l.b16 %v275
    %v1203 = vunpack.c.h.b16 %v275
    %v1204 = vunpack.c.l.b16 %v276
    %v1205 = vunpack.c.h.b16 %v276
    %v1206 = vunpack.c.l.b16 %v277
    %v1207 = vunpack.c.h.b16 %v277
    %v1208 = vunpack.c.l.b16 %v278
    %v1209 = vunpack.c.h.b16 %v278
    %v1210 = vunpack.c.l.b16 %v279
    %v1211 = vunpack.c.h.b16 %v279
    %v1212 = vunpack.c.l.b16 %v280
    %v1213 = vunpack.c.h.b16 %v280
    %v1214 = vunpack.c.l.b16 %v281
    %v1215 = vunpack.c.h.b16 %v281
    %v1216 = vunpack.c.l.b16 %v282
    %v1217 = vunpack.c.h.b16 %v282
    %v1218 = vunpack.c.l.b16 %v283
    %v1219 = vunpack.c.h.b16 %v283
    %v1220 = vunpack.c.l.b16 %v284
    %v1221 = vunpack.c.h.b16 %v284
    %v1222 = vunpack.c.l.b16 %v285
    %v1223 = vunpack.c.h.b16 %v285
    %v1224 = vunpack.c.l.b16 %v286
    %v1225 = vunpack.c.h.b16 %v286
    %v1226 = vunpack.c.l.b16 %v287
    %v1227 = vunpack.c.h.b16 %v287
    %v1228 = vunpack.c.l.b16 %v288
    %v1229 = vunpack.c.h.b16 %v288
    %v1230 = vunpack.c.l.b16 %v289
    %v1231 = vunpack.c.h.b16 %v289
    %v1232 = vunpack.c.l.b16 %v290
    %v1233 = vunpack.c.h.b16 %v290
    %v1234 = vunpack.c.l.b16 %v291
    %v1235 = vunpack.c.h.b16 %v291
    %v1236 = vunpack.c.l.b16 %v292
    %v1237 = vunpack.c.h.b16 %v292
    %v1238 = vunpack.c.l.b16 %v293
    %v1239 = vunpack.c.h.b16 %v293
    %v1240 = vunpack.c.l.b16 %v294
    %v1241 = vunpack.c.h.b16 %v294
    %v1242 = vunpack.c.l.b16 %v295
    %v1243 = vunpack.c.h.b16 %v295
    %v1244 = vunpack.c.l.b16 %v296
    %v1245 = vunpack.c.h.b16 %v296
    %v1246 = vunpack.c.l.b16 %v297
    %v1247 = vunpack.c.h.b16 %v297
    %v1248 = vunpack.c.l.b16 %v298
    %v1249 = vunpack.c.h.b16 %v298
    %v1250 = vunpack.c.l.b16 %v299
    %v1251 = vunpack.c.h.b16 %v299
    %v1252 = vunpack.c.l.b16 %v300
    %v1253 = vunpack.c.h.b16 %v300
    %v1254 = vunpack.c.l.b16 %v301
    %v1255 = vunpack.c.h.b16 %v301
    %v1256 = vunpack.c.l.b16 %v302
    %v1257 = vunpack.c.h.b16 %v302
    %v1258 = vunpack.c.l.b16 %v303
    %v1259 = vunpack.c.h.b16 %v303
    %v1260 = vunpack.c.l.b16 %v304
    %v1261 = vunpack.c.h.b16 %v304
    %v1262 = vunpack.c.l.b16 %v305
    %v1263 = vunpack.c.h.b16 %v305
    %v1264 = vunpack.c.l.b16 %v306
    %v1265 = vunpack.c.h.b16 %v306
    %v1266 = vunpack.c.l.b16 %v307
    %v1267 = vunpack.c.h.b16 %v307
    %v1268 = vunpack.c.l.b16 %v308
    %v1269 = vunpack.c.h.b16 %v308
    %v1270 = vunpack.c.l.b16 %v309
    %v1271 = vunpack.c.h.b16 %v309
    %v1272 = vunpack.c.l.b16 %v310
    %v1273 = vunpack.c.h.b16 %v310
    %v1274 = vunpack.c.l.b16 %v311
    %v1275 = vunpack.c.h.b16 %v311
    %v1276 = vunpack.c.l.b16 %v312
    %v1277 = vunpack.c.h.b16 %v312
    %v1278 = vunpack.c.l.b16 %v313
    %v1279 = vunpack.c.h.b16 %v313
    %v1280 = vunpack.c.l.b16 %v314
    %v1281 = vunpack.c.h.b16 %v314
    %v1282 = vunpack.c.l.b16 %v315
    %v1283 = vunpack.c.h.b16 %v315
    %v1284 = vunpack.c.l.b16 %v316
    %v1285 = vunpack.c.h.b16 %v316
    %v1286 = vunpack.c.l.b16 %v317
    %v1287 = vunpack.c.h.b16 %v317
    %v1288 = vunpack.c.l.b16 %v318
    %v1289 = vunpack.c.h.b16 %v318
    %v1290 = vunpack.c.l.b16 %v319
    %v1291 = vunpack.c.h.b16 %v319
    %v1292 = vunpack.c.l.b16 %v320
    %v1293 = vunpack.c.h.b16 %v320
    %v1294 = vunpack.c.l.b16 %v321
    %v1295 = vunpack.c.h.b16 %v321
    %v1296 = vunpack.c.l.b16 %v322
    %v1297 = vunpack.c.h.b16 %v322
    %v1298 = vunpack.c.l.b16 %v323
    %v1299 = vunpack.c.h.b16 %v323
    %v1300 = vunpack.c.l.b16 %v324
    %v1301 = vunpack.c.h.b16 %v324
    %v1302 = vunpack.c.l.b16 %v325
    %v1303 = vunpack.c.h.b16 %v325
    %v1304 = vunpack.c.l.b16 %v326
    %v1305 = vunpack.c.h.b16 %v326
    %v1306 = vunpack.c.l.b16 %v327
    %v1307 = vunpack.c.h.b16 %v327
    %v1308 = vunpack.c.l.b16 %v328
    %v1309 = vunpack.c.h.b16 %v328
    %v1310 = vunpack.c.l.b16 %v329
    %v1311 = vunpack.c.h.b16 %v329
    %v1312 = vunpack.c.l.b16 %v330
    %v1313 = vunpack.c.h.b16 %v330
    %v1314 = vunpack.c.l.b16 %v331
    %v1315 = vunpack.c.h.b16 %v331
    %v1316 = vunpack.c.l.b16 %v332
    %v1317 = vunpack.c.h.b16 %v332
    %v1318 = vunpack.c.l.b16 %v333
    %v1319 = vunpack.c.h.b16 %v333
    %v1320 = vunpack.c.l.b16 %v334
    %v1321 = vunpack.c.h.b16 %v334
    %v1322 = vunpack.c.l.b16 %v335
    %v1323 = vunpack.c.h.b16 %v335
    %v1324 = vunpack.c.l.b16 %v336
    %v1325 = vunpack.c.h.b16 %v336
    %v1326 = vunpack.c.l.b16 %v337
    %v1327 = vunpack.c.h.b16 %v337
    %v1328 = vunpack.c.l.b16 %v338
    %v1329 = vunpack.c.h.b16 %v338
    %v1330 = vunpack.c.l.b16 %v339
    %v1331 = vunpack.c.h.b16 %v339
    %v1332 = vunpack.c.l.b16 %v340
    %v1333 = vunpack.c.h.b16 %v340
    %v1334 = vunpack.c.l.b16 %v341
    %v1335 = vunpack.c.h.b16 %v341
    %v1336 = vunpack.c.l.b16 %v342
    %v1337 = vunpack.c.h.b16 %v342
    %v1338 = vunpack.c.l.b16 %v343
    %v1339 = vunpack.c.h.b16 %v343
    %v1340 = vunpack.c.l.b16 %v344
    %v1341 = vunpack.c.h.b16 %v344
    %v1342 = vunpack.c.l.b16 %v345
    %v1343 = vunpack.c.h.b16 %v345
    %v1344 = vunpack.c.l.b16 %v346
    %v1345 = vunpack.c.h.b16 %v346
    %v1346 = vunpack.c.l.b16 %v347
    %v1347 = vunpack.c.h.b16 %v347
    %v1348 = vunpack.c.l.b16 %v348
    %v1349 = vunpack.c.h.b16 %v348
    %v1350 = vunpack.c.l.b16 %v349
    %v1351 = vunpack.c.h.b16 %v349
    %v1352 = vunpack.c.l.b16 %v350
    %v1353 = vunpack.c.h.b16 %v350
    %v1354 = vunpack.c.l.b16 %v351
    %v1355 = vunpack.c.h.b16 %v351
    %v1356 = vunpack.c.l.b16 %v352
    %v1357 = vunpack.c.h.b16 %v352
    %v1358 = vunpack.c.l.b16 %v353
    %v1359 = vunpack.c.h.b16 %v353
    %v1360 = vunpack.c.l.b16 %v354
    %v1361 = vunpack.c.h.b16 %v354
    %v1362 = vunpack.c.l.b16 %v355
    %v1363 = vunpack.c.h.b16 %v355
    %v1364 = vunpack.c.l.b16 %v356
    %v1365 = vunpack.c.h.b16 %v356
    %v1366 = vunpack.c.l.b16 %v357
    %v1367 = vunpack.c.h.b16 %v357
    %v1368 = vunpack.c.l.b16 %v358
    %v1369 = vunpack.c.h.b16 %v358
    %v1370 = vunpack.c.l.b16 %v359
    %v1371 = vunpack.c.h.b16 %v359
    %v1372 = vunpack.c.l.b16 %v360
    %v1373 = vunpack.c.h.b16 %v360
    %v1374 = vunpack.c.l.b16 %v361
    %v1375 = vunpack.c.h.b16 %v361
    %v1376 = vunpack.c.l.b16 %v362
    %v1377 = vunpack.c.h.b16 %v362
    %v1378 = vunpack.c.l.b16 %v363
    %v1379 = vunpack.c.h.b16 %v363
    %v1380 = vunpack.c.l.b16 %v364
    %v1381 = vunpack.c.h.b16 %v364
    %v1382 = vunpack.c.l.b16 %v365
    %v1383 = vunpack.c.h.b16 %v365
    %v1384 = vunpack.c.l.b16 %v366
    %v1385 = vunpack.c.h.b16 %v366
    %v1386 = vunpack.c.l.b16 %v367
    %v1387 = vunpack.c.h.b16 %v367
    %v1388 = vunpack.c.l.b16 %v368
    %v1389 = vunpack.c.h.b16 %v368
    %v1390 = vunpack.c.l.b16 %v369
    %v1391 = vunpack.c.h.b16 %v369
    %v1392 = vunpack.c.l.b16 %v370
    %v1393 = vunpack.c.h.b16 %v370
    %v1394 = vunpack.c.l.b16 %v371
    %v1395 = vunpack.c.h.b16 %v371
    %v1396 = vunpack.c.l.b16 %v372
    %v1397 = vunpack.c.h.b16 %v372
    %v1398 = vunpack.c.l.b16 %v373
    %v1399 = vunpack.c.h.b16 %v373
    %v1400 = vunpack.c.l.b16 %v374
    %v1401 = vunpack.c.h.b16 %v374
    %v1402 = vunpack.c.l.b16 %v375
    %v1403 = vunpack.c.h.b16 %v375
    %v1404 = vunpack.c.l.b16 %v376
    %v1405 = vunpack.c.h.b16 %v376
    %v1406 = vunpack.c.l.b16 %v377
    %v1407 = vunpack.c.h.b16 %v377
    %v1408 = vunpack.c.l.b16 %v378
    %v1409 = vunpack.c.h.b16 %v378
    %v1410 = vunpack.c.l.b16 %v379
    %v1411 = vunpack.c.h.b16 %v379
    %v1412 = vunpack.c.l.b16 %v380
    %v1413 = vunpack.c.h.b16 %v380
    %v1414 = vunpack.c.l.b16 %v381
    %v1415 = vunpack.c.h.b16 %v381
    %v1416 = vunpack.c.l.b16 %v382
    %v1417 = vunpack.c.h.b16 %v382
    %v1418 = vunpack.c.l.b16 %v383
    %v1419 = vunpack.c.h.b16 %v383
    %v1420 = vunpack.c.l.b16 %v384
    %v1421 = vunpack.c.h.b16 %v384
    %v1422 = vunpack.c.l.b16 %v385
    %v1423 = vunpack.c.h.b16 %v385
    %v1424 = vunpack.c.l.b16 %v386
    %v1425 = vunpack.c.h.b16 %v386
    %v1426 = vunpack.c.l.b16 %v387
    %v1427 = vunpack.c.h.b16 %v387
    %v1428 = vunpack.c.l.b16 %v388
    %v1429 = vunpack.c.h.b16 %v388
    %v1430 = vunpack.c.l.b16 %v389
    %v1431 = vunpack.c.h.b16 %v389
    %v1432 = vunpack.c.l.b16 %v390
    %v1433 = vunpack.c.h.b16 %v390
    %v1434 = vunpack.c.l.b16 %v391
    %v1435 = vunpack.c.h.b16 %v391
    %v1436 = vunpack.c.l.b16 %v392
    %v1437 = vunpack.c.h.b16 %v392
    %v1438 = vunpack.c.l.b16 %v393
    %v1439 = vunpack.c.h.b16 %v393
    %v1440 = vunpack.c.l.b16 %v394
    %v1441 = vunpack.c.h.b16 %v394
    %v1442 = vunpack.c.l.b16 %v395
    %v1443 = vunpack.c.h.b16 %v395
    %v1444 = vunpack.c.l.b16 %v396
    %v1445 = vunpack.c.h.b16 %v396
    %v1446 = vunpack.c.l.b16 %v397
    %v1447 = vunpack.c.h.b16 %v397
    %v1448 = vunpack.c.l.b16 %v398
    %v1449 = vunpack.c.h.b16 %v398
    %v1450 = vunpack.c.l.b16 %v399
    %v1451 = vunpack.c.h.b16 %v399
    %v1452 = vunpack.c.l.b16 %v400
    %v1453 = vunpack.c.h.b16 %v400
    %v1454 = vunpack.c.l.b16 %v401
    %v1455 = vunpack.c.h.b16 %v401
    %v1456 = vunpack.c.l.b16 %v402
    %v1457 = vunpack.c.h.b16 %v402
    %v1458 = vunpack.c.l.b16 %v403
    %v1459 = vunpack.c.h.b16 %v403
    %v1460 = vunpack.c.l.b16 %v404
    %v1461 = vunpack.c.h.b16 %v404
    %v1462 = vunpack.c.l.b16 %v405
    %v1463 = vunpack.c.h.b16 %v405
    %v1464 = vunpack.c.l.b16 %v406
    %v1465 = vunpack.c.h.b16 %v406
    %v1466 = vunpack.c.l.b16 %v407
    %v1467 = vunpack.c.h.b16 %v407
    %v1468 = vunpack.c.l.b16 %v408
    %v1469 = vunpack.c.h.b16 %v408
    %v1470 = vunpack.c.l.b16 %v409
    %v1471 = vunpack.c.h.b16 %v409
    %v1472 = vunpack.c.l.b16 %v410
    %v1473 = vunpack.c.h.b16 %v410
    %v1474 = vunpack.c.l.b16 %v411
    %v1475 = vunpack.c.h.b16 %v411
    %v1476 = vunpack.c.l.b16 %v412
    %v1477 = vunpack.c.h.b16 %v412
    %v1478 = vunpack.c.l.b16 %v413
    %v1479 = vunpack.c.h.b16 %v413
    %v1480 = vunpack.c.l.b16 %v414
    %v1481 = vunpack.c.h.b16 %v414
    %v1482 = vunpack.c.l.b16 %v415
    %v1483 = vunpack.c.h.b16 %v415
    %v1484 = vunpack.c.l.b16 %v416
    %v1485 = vunpack.c.h.b16 %v416
    %v1486 = vunpack.c.l.b16 %v417
    %v1487 = vunpack.c.h.b16 %v417
    %v1488 = vunpack.c.l.b16 %v418
    %v1489 = vunpack.c.h.b16 %v418
    %v1490 = vunpack.c.l.b16 %v419
    %v1491 = vunpack.c.h.b16 %v419
    %v1492 = vunpack.c.l.b16 %v420
    %v1493 = vunpack.c.h.b16 %v420
    %v1494 = vunpack.c.l.b16 %v421
    %v1495 = vunpack.c.h.b16 %v421
    %v1496 = vunpack.c.l.b16 %v422
    %v1497 = vunpack.c.h.b16 %v422
    %v1498 = vunpack.c.l.b16 %v423
    %v1499 = vunpack.c.h.b16 %v423
    %v1500 = vunpack.c.l.b16 %v424
    %v1501 = vunpack.c.h.b16 %v424
    %v1502 = vunpack.c.l.b16 %v425
    %v1503 = vunpack.c.h.b16 %v425
    %v1504 = vunpack.c.l.b16 %v426
    %v1505 = vunpack.c.h.b16 %v426
    %v1506 = vunpack.c.l.b16 %v427
    %v1507 = vunpack.c.h.b16 %v427
    %v1508 = vunpack.c.l.b16 %v428
    %v1509 = vunpack.c.h.b16 %v428
    %v1510 = vunpack.c.l.b16 %v429
    %v1511 = vunpack.c.h.b16 %v429
    %v1512 = vunpack.c.l.b16 %v430
    %v1513 = vunpack.c.h.b16 %v430
    %v1514 = vunpack.c.l.b16 %v431
    %v1515 = vunpack.c.h.b16 %v431
    %v1516 = vunpack.c.l.b16 %v432
    %v1517 = vunpack.c.h.b16 %v432
    %v1518 = vunpack.c.l.b16 %v433
    %v1519 = vunpack.c.h.b16 %v433
    %v1520 = vunpack.c.l.b16 %v434
    %v1521 = vunpack.c.h.b16 %v434
    %v1522 = vunpack.c.l.b16 %v435
    %v1523 = vunpack.c.h.b16 %v435
    %v1524 = vunpack.c.l.b16 %v436
    %v1525 = vunpack.c.h.b16 %v436
    %v1526 = vunpack.c.l.b16 %v437
    %v1527 = vunpack.c.h.b16 %v437
    %v1528 = vunpack.c.l.b16 %v438
    %v1529 = vunpack.c.h.b16 %v438
    %v1530 = vunpack.c.l.b16 %v439
    %v1531 = vunpack.c.h.b16 %v439
    %v1532 = vunpack.c.l.b16 %v440
    %v1533 = vunpack.c.h.b16 %v440
    %v1534 = vunpack.c.l.b16 %v441
    %v1535 = vunpack.c.h.b16 %v441
    %v1536 = vunpack.c.l.b16 %v442
    %v1537 = vunpack.c.h.b16 %v442
    %v1538 = vunpack.c.l.b16 %v443
    %v1539 = vunpack.c.h.b16 %v443
    %v1540 = vunpack.c.l.b16 %v444
    %v1541 = vunpack.c.h.b16 %v444
    %v1542 = vunpack.c.l.b16 %v445
    %v1543 = vunpack.c.h.b16 %v445
    %v1544 = vunpack.c.l.b16 %v446
    %v1545 = vunpack.c.h.b16 %v446
    %v1546 = vunpack.c.l.b16 %v447
    %v1547 = vunpack.c.h.b16 %v447
    %v1548 = vunpack.c.l.b16 %v448
    %v1549 = vunpack.c.h.b16 %v448
    %v1550 = vunpack.c.l.b16 %v449
    %v1551 = vunpack.c.h.b16 %v449
    %v1552 = vunpack.c.l.b16 %v450
    %v1553 = vunpack.c.h.b16 %v450
    %v1554 = vunpack.c.l.b16 %v451
    %v1555 = vunpack.c.h.b16 %v451
    %v1556 = vunpack.c.l.b16 %v452
    %v1557 = vunpack.c.h.b16 %v452
    %v1558 = vunpack.c.l.b16 %v453
    %v1559 = vunpack.c.h.b16 %v453
    %v1560 = vunpack.c.l.b16 %v454
    %v1561 = vunpack.c.h.b16 %v454
    %v1562 = vunpack.c.l.b16 %v455
    %v1563 = vunpack.c.h.b16 %v455
    %v1564 = vunpack.c.l.b16 %v456
    %v1565 = vunpack.c.h.b16 %v456
    %v1566 = vunpack.c.l.b16 %v457
    %v1567 = vunpack.c.h.b16 %v457
    %v1568 = vunpack.c.l.b16 %v458
    %v1569 = vunpack.c.h.b16 %v458
    %v1570 = vunpack.c.l.b16 %v459
    %v1571 = vunpack.c.h.b16 %v459
    %v1572 = vunpack.c.l.b16 %v460
    %v1573 = vunpack.c.h.b16 %v460
    %v1574 = vunpack.c.l.b16 %v461
    %v1575 = vunpack.c.h.b16 %v461
    %v1576 = vunpack.c.l.b16 %v462
    %v1577 = vunpack.c.h.b16 %v462
    %v1578 = vunpack.c.l.b16 %v463
    %v1579 = vunpack.c.h.b16 %v463
    %v1580 = vunpack.c.l.b16 %v464
    %v1581 = vunpack.c.h.b16 %v464
    %v1582 = vunpack.c.l.b16 %v465
    %v1583 = vunpack.c.h.b16 %v465
    %v1584 = vunpack.c.l.b16 %v466
    %v1585 = vunpack.c.h.b16 %v466
    %v1586 = vunpack.c.l.b16 %v467
    %v1587 = vunpack.c.h.b16 %v467
    %v1588 = vunpack.c.l.b16 %v468
    %v1589 = vunpack.c.h.b16 %v468
    %v1590 = vunpack.c.l.b16 %v469
    %v1591 = vunpack.c.h.b16 %v469
    %v1592 = vunpack.c.l.b16 %v470
    %v1593 = vunpack.c.h.b16 %v470
    %v1594 = vunpack.c.l.b16 %v471
    %v1595 = vunpack.c.h.b16 %v471
    %v1596 = vunpack.c.l.b16 %v472
    %v1597 = vunpack.c.h.b16 %v472
    %v1598 = vunpack.c.l.b16 %v473
    %v1599 = vunpack.c.h.b16 %v473
    %v1600 = vunpack.c.l.b16 %v474
    %v1601 = vunpack.c.h.b16 %v474
    %v1602 = vunpack.c.l.b16 %v475
    %v1603 = vunpack.c.h.b16 %v475
    %v1604 = vunpack.c.l.b16 %v476
    %v1605 = vunpack.c.h.b16 %v476
    %v1606 = vunpack.c.l.b16 %v477
    %v1607 = vunpack.c.h.b16 %v477
    %v1608 = vunpack.c.l.b16 %v478
    %v1609 = vunpack.c.h.b16 %v478
    %v1610 = vunpack.c.l.b16 %v479
    %v1611 = vunpack.c.h.b16 %v479
    %v1612 = vunpack.c.l.b16 %v480
    %v1613 = vunpack.c.h.b16 %v480
    %v1614 = vunpack.c.l.b16 %v481
    %v1615 = vunpack.c.h.b16 %v481
    %v1616 = vunpack.c.l.b16 %v482
    %v1617 = vunpack.c.h.b16 %v482
    %v1618 = vunpack.c.l.b16 %v483
    %v1619 = vunpack.c.h.b16 %v483
    %v1620 = vunpack.c.l.b16 %v484
    %v1621 = vunpack.c.h.b16 %v484
    %v1622 = vunpack.c.l.b16 %v485
    %v1623 = vunpack.c.h.b16 %v485
    %v1624 = vunpack.c.l.b16 %v486
    %v1625 = vunpack.c.h.b16 %v486
    %v1626 = vunpack.c.l.b16 %v487
    %v1627 = vunpack.c.h.b16 %v487
    %v1628 = vunpack.c.l.b16 %v488
    %v1629 = vunpack.c.h.b16 %v488
    %v1630 = vunpack.c.l.b16 %v489
    %v1631 = vunpack.c.h.b16 %v489
    %v1632 = vunpack.c.l.b16 %v490
    %v1633 = vunpack.c.h.b16 %v490
    %v1634 = vunpack.c.l.b16 %v491
    %v1635 = vunpack.c.h.b16 %v491
    %v1636 = vunpack.c.l.b16 %v492
    %v1637 = vunpack.c.h.b16 %v492
    %v1638 = vunpack.c.l.b16 %v493
    %v1639 = vunpack.c.h.b16 %v493
    %v1640 = vunpack.c.l.b16 %v494
    %v1641 = vunpack.c.h.b16 %v494
    %v1642 = vunpack.c.l.b16 %v495
    %v1643 = vunpack.c.h.b16 %v495
    %v1644 = vunpack.c.l.b16 %v496
    %v1645 = vunpack.c.h.b16 %v496
    %v1646 = vunpack.c.l.b16 %v497
    %v1647 = vunpack.c.h.b16 %v497
    %v1648 = vunpack.c.l.b16 %v498
    %v1649 = vunpack.c.h.b16 %v498
    %v1650 = vunpack.c.l.b16 %v499
    %v1651 = vunpack.c.h.b16 %v499
    %v1652 = vunpack.c.l.b16 %v500
    %v1653 = vunpack.c.h.b16 %v500
    %v1654 = vunpack.c.l.b16 %v501
    %v1655 = vunpack.c.h.b16 %v501
    %v1656 = vunpack.c.l.b16 %v502
    %v1657 = vunpack.c.h.b16 %v502
    %v1658 = vunpack.c.l.b16 %v503
    %v1659 = vunpack.c.h.b16 %v503
    %v1660 = vunpack.c.l.b16 %v504
    %v1661 = vunpack.c.h.b16 %v504
    %v1662 = vunpack.c.l.b16 %v505
    %v1663 = vunpack.c.h.b16 %v505
    %v1664 = vunpack.c.l.b16 %v506
    %v1665 = vunpack.c.h.b16 %v506
    %v1666 = vunpack.c.l.b16 %v507
    %v1667 = vunpack.c.h.b16 %v507
    %v1668 = vunpack.c.l.b16 %v508
    %v1669 = vunpack.c.h.b16 %v508
    %v1670 = vunpack.c.l.b16 %v509
    %v1671 = vunpack.c.h.b16 %v509
    %v1672 = vunpack.c.l.b16 %v510
    %v1673 = vunpack.c.h.b16 %v510
    %v1674 = vunpack.c.l.b16 %v511
    %v1675 = vunpack.c.h.b16 %v511
    %v1676 = vunpack.c.l.b16 %v512
    %v1677 = vunpack.c.h.b16 %v512
    %v1678 = vunpack.c.l.b16 %v513
    %v1679 = vunpack.c.h.b16 %v513
    %v1680 = vunpack.c.l.b16 %v514
    %v1681 = vunpack.c.h.b16 %v514
    %v1682 = vunpack.c.l.b16 %v515
    %v1683 = vunpack.c.h.b16 %v515
    %v1684 = vunpack.c.l.b16 %v516
    %v1685 = vunpack.c.h.b16 %v516
    %v1686 = vunpack.c.l.b16 %v517
    %v1687 = vunpack.c.h.b16 %v517
    %v1688 = vunpack.c.l.b16 %v518
    %v1689 = vunpack.c.h.b16 %v518
    %v1690 = vunpack.c.l.b16 %v519
    %v1691 = vunpack.c.h.b16 %v519
    %v1692 = vunpack.c.l.b16 %v520
    %v1693 = vunpack.c.h.b16 %v520
    %v1694 = vunpack.c.l.b16 %v521
    %v1695 = vunpack.c.h.b16 %v521
    %v1696 = vpack.c.b16 %v932, %v928
    %v1697 = vpack.c.b16 %v933, %v929
    %v1698 = vpack.c.b16 %v934, %v930
    %v1699 = vpack.c.b16 %v935, %v931
    %v1700 = vpack.c.b16 %v940, %v936
    %v1701 = vpack.c.b16 %v941, %v937
    %v1702 = vpack.c.b16 %v942, %v938
    %v1703 = vpack.c.b16 %v943, %v939
    %v1704 = vpack.c.b16 %v948, %v944
    %v1705 = vpack.c.b16 %v949, %v945
    %v1706 = vpack.c.b16 %v950, %v946
    %v1707 = vpack.c.b16 %v951, %v947
    %v1708 = vpack.c.b16 %v956, %v952
    %v1709 = vpack.c.b16 %v957, %v953
    %v1710 = vpack.c.b16 %v958, %v954
    %v1711 = vpack.c.b16 %v959, %v955
    %v1712 = vpack.c.b16 %v964, %v960
    %v1713 = vpack.c.b16 %v965, %v961
    %v1714 = vpack.c.b16 %v966, %v962
    %v1715 = vpack.c.b16 %v967, %v963
    %v1716 = vpack.c.b16 %v972, %v968
    %v1717 = vpack.c.b16 %v973, %v969
    %v1718 = vpack.c.b16 %v974, %v970
    %v1719 = vpack.c.b16 %v975, %v971
    %v1720 = vpack.c.b16 %v980, %v976
    %v1721 = vpack.c.b16 %v981, %v977
    %v1722 = vpack.c.b16 %v982, %v978
    %v1723 = vpack.c.b16 %v983, %v979
    %v1724 = vpack.c.b16 %v988, %v984
    %v1725 = vpack.c.b16 %v989, %v985
    %v1726 = vpack.c.b16 %v990, %v986
    %v1727 = vpack.c.b16 %v991, %v987
    %v1728 = vpack.c.b16 %v996, %v992
    %v1729 = vpack.c.b16 %v997, %v993
    %v1730 = vpack.c.b16 %v998, %v994
    %v1731 = vpack.c.b16 %v999, %v995
    %v1732 = vpack.c.b16 %v1004, %v1000
    %v1733 = vpack.c.b16 %v1005, %v1001
    %v1734 = vpack.c.b16 %v1006, %v1002
    %v1735 = vpack.c.b16 %v1007, %v1003
    %v1736 = vpack.c.b16 %v1012, %v1008
    %v1737 = vpack.c.b16 %v1013, %v1009
    %v1738 = vpack.c.b16 %v1014, %v1010
    %v1739 = vpack.c.b16 %v1015, %v1011
    %v1740 = vpack.c.b16 %v1020, %v1016
    %v1741 = vpack.c.b16 %v1021, %v1017
    %v1742 = vpack.c.b16 %v1022, %v1018
    %v1743 = vpack.c.b16 %v1023, %v1019
    %v1744 = vpack.c.b16 %v1028, %v1024
    %v1745 = vpack.c.b16 %v1029, %v1025
    %v1746 = vpack.c.b16 %v1030, %v1026
    %v1747 = vpack.c.b16 %v1031, %v1027
    %v1748 = vpack.c.b16 %v1036, %v1032
    %v1749 = vpack.c.b16 %v1037, %v1033
    %v1750 = vpack.c.b16 %v1038, %v1034
    %v1751 = vpack.c.b16 %v1039, %v1035
    %v1752 = vpack.c.b16 %v1044, %v1040
    %v1753 = vpack.c.b16 %v1045, %v1041
    %v1754 = vpack.c.b16 %v1046, %v1042
    %v1755 = vpack.c.b16 %v1047, %v1043
    %v1756 = vpack.c.b16 %v1052, %v1048
    %v1757 = vpack.c.b16 %v1053, %v1049
    %v1758 = vpack.c.b16 %v1054, %v1050
    %v1759 = vpack.c.b16 %v1055, %v1051
    %v1760 = vpack.c.b16 %v1060, %v1056
    %v1761 = vpack.c.b16 %v1061, %v1057
    %v1762 = vpack.c.b16 %v1062, %v1058
    %v1763 = vpack.c.b16 %v1063, %v1059
    %v1764 = vpack.c.b16 %v1068, %v1064
    %v1765 = vpack.c.b16 %v1069, %v1065
    %v1766 = vpack.c.b16 %v1070, %v1066
    %v1767 = vpack.c.b16 %v1071, %v1067
    %v1768 = vpack.c.b16 %v1076, %v1072
    %v1769 = vpack.c.b16 %v1077, %v1073
    %v1770 = vpack.c.b16 %v1078, %v1074
    %v1771 = vpack.c.b16 %v1079, %v1075
    %v1772 = vpack.c.b16 %v1084, %v1080
    %v1773 = vpack.c.b16 %v1085, %v1081
    %v1774 = vpack.c.b16 %v1086, %v1082
    %v1775 = vpack.c.b16 %v1087, %v1083
    %v1776 = vpack.c.b16 %v1092, %v1088
    %v1777 = vpack.c.b16 %v1093, %v1089
    %v1778 = vpack.c.b16 %v1094, %v1090
    %v1779 = vpack.c.b16 %v1095, %v1091
    %v1780 = vpack.c.b16 %v1100, %v1096
    %v1781 = vpack.c.b16 %v1101, %v1097
    %v1782 = vpack.c.b16 %v1102, %v1098
    %v1783 = vpack.c.b16 %v1103, %v1099
    %v1784 = vpack.c.b16 %v1108, %v1104
    %v1785 = vpack.c.b16 %v1109, %v1105
    %v1786 = vpack.c.b16 %v1110, %v1106
    %v1787 = vpack.c.b16 %v1111, %v1107
    %v1788 = vpack.c.b16 %v1116, %v1112
    %v1789 = vpack.c.b16 %v1117, %v1113
    %v1790 = vpack.c.b16 %v1118, %v1114
    %v1791 = vpack.c.b16 %v1119, %v1115
    %v1792 = vpack.c.b16 %v1124, %v1120
    %v1793 = vpack.c.b16 %v1125, %v1121
    %v1794 = vpack.c.b16 %v1126, %v1122
    %v1795 = vpack.c.b16 %v1127, %v1123
    %v1796 = vpack.c.b16 %v1132, %v1128
    %v1797 = vpack.c.b16 %v1133, %v1129
    %v1798 = vpack.c.b16 %v1134, %v1130
    %v1799 = vpack.c.b16 %v1135, %v1131
    %v1800 = vpack.c.b16 %v1140, %v1136
    %v1801 = vpack.c.b16 %v1141, %v1137
    %v1802 = vpack.c.b16 %v1142, %v1138
    %v1803 = vpack.c.b16 %v1143, %v1139
    %v1804 = vpack.c.b16 %v1148, %v1144
    %v1805 = vpack.c.b16 %v1149, %v1145
    %v1806 = vpack.c.b16 %v1150, %v1146
    %v1807 = vpack.c.b16 %v1151, %v1147
    %v1808 = vpack.c.b16 %v1156, %v1152
    %v1809 = vpack.c.b16 %v1157, %v1153
    %v1810 = vpack.c.b16 %v1158, %v1154
    %v1811 = vpack.c.b16 %v1159, %v1155
    %v1812 = vpack.c.b16 %v1164, %v1160
    %v1813 = vpack.c.b16 %v1165, %v1161
    %v1814 = vpack.c.b16 %v1166, %v1162
    %v1815 = vpack.c.b16 %v1167, %v1163
    %v1816 = vpack.c.b16 %v1172, %v1168
    %v1817 = vpack.c.b16 %v1173, %v1169
    %v1818 = vpack.c.b16 %v1174, %v1170
    %v1819 = vpack.c.b16 %v1175, %v1171
    %v1820 = vpack.c.b16 %v1180, %v1176
    %v1821 = vpack.c.b16 %v1181, %v1177
    %v1822 = vpack.c.b16 %v1182, %v1178
    %v1823 = vpack.c.b16 %v1183, %v1179
    %v1824 = vpack.c.b16 %v1188, %v1184
    %v1825 = vpack.c.b16 %v1189, %v1185
    %v1826 = vpack.c.b16 %v1190, %v1186
    %v1827 = vpack.c.b16 %v1191, %v1187
    %v1828 = vpack.c.b16 %v1196, %v1192
    %v1829 = vpack.c.b16 %v1197, %v1193
    %v1830 = vpack.c.b16 %v1198, %v1194
    %v1831 = vpack.c.b16 %v1199, %v1195
    %v1832 = vpack.c.b16 %v1204, %v1200
    %v1833 = vpack.c.b16 %v1205, %v1201
    %v1834 = vpack.c.b16 %v1206, %v1202
    %v1835 = vpack.c.b16 %v1207, %v1203
    %v1836 = vpack.c.b16 %v1212, %v1208
    %v1837 = vpack.c.b16 %v1213, %v1209
    %v1838 = vpack.c.b16 %v1214, %v1210
    %v1839 = vpack.c.b16 %v1215, %v1211
    %v1840 = vpack.c.b16 %v1220, %v1216
    %v1841 = vpack.c.b16 %v1221, %v1217
    %v1842 = vpack.c.b16 %v1222, %v1218
    %v1843 = vpack.c.b16 %v1223, %v1219
    %v1844 = vpack.c.b16 %v1228, %v1224
    %v1845 = vpack.c.b16 %v1229, %v1225
    %v1846 = vpack.c.b16 %v1230, %v1226
    %v1847 = vpack.c.b16 %v1231, %v1227
    %v1848 = vpack.c.b16 %v1236, %v1232
    %v1849 = vpack.c.b16 %v1237, %v1233
    %v1850 = vpack.c.b16 %v1238, %v1234
    %v1851 = vpack.c.b16 %v1239, %v1235
    %v1852 = vpack.c.b16 %v1244, %v1240
    %v1853 = vpack.c.b16 %v1245, %v1241
    %v1854 = vpack.c.b16 %v1246, %v1242
    %v1855 = vpack.c.b16 %v1247, %v1243
    %v1856 = vpack.c.b16 %v1252, %v1248
    %v1857 = vpack.c.b16 %v1253, %v1249
    %v1858 = vpack.c.b16 %v1254, %v1250
    %v1859 = vpack.c.b16 %v1255, %v1251
    %v1860 = vpack.c.b16 %v1260, %v1256
    %v1861 = vpack.c.b16 %v1261, %v1257
    %v1862 = vpack.c.b16 %v1262, %v1258
    %v1863 = vpack.c.b16 %v1263, %v1259
    %v1864 = vpack.c.b16 %v1268, %v1264
    %v1865 = vpack.c.b16 %v1269, %v1265
    %v1866 = vpack.c.b16 %v1270, %v1266
    %v1867 = vpack.c.b16 %v1271, %v1267
    %v1868 = vpack.c.b16 %v1276, %v1272
    %v1869 = vpack.c.b16 %v1277, %v1273
    %v1870 = vpack.c.b16 %v1278, %v1274
    %v1871 = vpack.c.b16 %v1279, %v1275
    %v1872 = vpack.c.b16 %v1284, %v1280
    %v1873 = vpack.c.b16 %v1285, %v1281
    %v1874 = vpack.c.b16 %v1286, %v1282
    %v1875 = vpack.c.b16 %v1287, %v1283
    %v1876 = vpack.c.b16 %v1292, %v1288
    %v1877 = vpack.c.b16 %v1293, %v1289
    %v1878 = vpack.c.b16 %v1294, %v1290
    %v1879 = vpack.c.b16 %v1295, %v1291
    %v1880 = vpack.c.b16 %v1300, %v1296
    %v1881 = vpack.c.b16 %v1301, %v1297
    %v1882 = vpack.c.b16 %v1302, %v1298
    %v1883 = vpack.c.b16 %v1303, %v1299
    %v1884 = vpack.c.b16 %v1308, %v1304
    %v1885 = vpack.c.b16 %v1309, %v1305
    %v1886 = vpack.c.b16 %v1310, %v1306
    %v1887 = vpack.c.b16 %v1311, %v1307
    %v1888 = vpack.c.b16 %v1316, %v1312
    %v1889 = vpack.c.b16 %v1317, %v1313
    %v1890 = vpack.c.b16 %v1318, %v1314
    %v1891 = vpack.c.b16 %v1319, %v1315
    %v1892 = vpack.c.b16 %v1324, %v1320
    %v1893 = vpack.c.b16 %v1325, %v1321
    %v1894 = vpack.c.b16 %v1326, %v1322
    %v1895 = vpack.c.b16 %v1327, %v1323
    %v1896 = vpack.c.b16 %v1332, %v1328
    %v1897 = vpack.c.b16 %v1333, %v1329
    %v1898 = vpack.c.b16 %v1334, %v1330
    %v1899 = vpack.c.b16 %v1335, %v1331
    %v1900 = vpack.c.b16 %v1340, %v1336
    %v1901 = vpack.c.b16 %v1341, %v1337
    %v1902 = vpack.c.b16 %v1342, %v1338
    %v1903 = vpack.c.b16 %v1343, %v1339
    %v1904 = vpack.c.b16 %v1348, %v1344
    %v1905 = vpack.c.b16 %v1349, %v1345
    %v1906 = vpack.c.b16 %v1350, %v1346
    %v1907 = vpack.c.b16 %v1351, %v1347
    %v1908 = vpack.c.b16 %v1356, %v1352
    %v1909 = vpack.c.b16 %v1357, %v1353
    %v1910 = vpack.c.b16 %v1358, %v1354
    %v1911 = vpack.c.b16 %v1359, %v1355
    %v1912 = vpack.c.b16 %v1364, %v1360
    %v1913 = vpack.c.b16 %v1365, %v1361
    %v1914 = vpack.c.b16 %v1366, %v1362
    %v1915 = vpack.c.b16 %v1367, %v1363
    %v1916 = vpack.c.b16 %v1372, %v1368
    %v1917 = vpack.c.b16 %v1373, %v1369
    %v1918 = vpack.c.b16 %v1374, %v1370
    %v1919 = vpack.c.b16 %v1375, %v1371
    %v1920 = vpack.c.b16 %v1380, %v1376
    %v1921 = vpack.c.b16 %v1381, %v1377
    %v1922 = vpack.c.b16 %v1382, %v1378
    %v1923 = vpack.c.b16 %v1383, %v1379
    %v1924 = vpack.c.b16 %v1388, %v1384
    %v1925 = vpack.c.b16 %v1389, %v1385
    %v1926 = vpack.c.b16 %v1390, %v1386
    %v1927 = vpack.c.b16 %v1391, %v1387
    %v1928 = vpack.c.b16 %v1396, %v1392
    %v1929 = vpack.c.b16 %v1397, %v1393
    %v1930 = vpack.c.b16 %v1398, %v1394
    %v1931 = vpack.c.b16 %v1399, %v1395
    %v1932 = vpack.c.b16 %v1404, %v1400
    %v1933 = vpack.c.b16 %v1405, %v1401
    %v1934 = vpack.c.b16 %v1406, %v1402
    %v1935 = vpack.c.b16 %v1407, %v1403
    %v1936 = vpack.c.b16 %v1412, %v1408
    %v1937 = vpack.c.b16 %v1413, %v1409
    %v1938 = vpack.c.b16 %v1414, %v1410
    %v1939 = vpack.c.b16 %v1415, %v1411
    %v1940 = vpack.c.b16 %v1420, %v1416
    %v1941 = vpack.c.b16 %v1421, %v1417
    %v1942 = vpack.c.b16 %v1422, %v1418
    %v1943 = vpack.c.b16 %v1423, %v1419
    %v1944 = vpack.c.b16 %v1428, %v1424
    %v1945 = vpack.c.b16 %v1429, %v1425
    %v1946 = vpack.c.b16 %v1430, %v1426
    %v1947 = vpack.c.b16 %v1431, %v1427
    %v1948 = vpack.c.b16 %v1436, %v1432
    %v1949 = vpack.c.b16 %v1437, %v1433
    %v1950 = vpack.c.b16 %v1438, %v1434
    %v1951 = vpack.c.b16 %v1439, %v1435
    %v1952 = vpack.c.b16 %v1444, %v1440
    %v1953 = vpack.c.b16 %v1445, %v1441
    %v1954 = vpack.c.b16 %v1446, %v1442
    %v1955 = vpack.c.b16 %v1447, %v1443
    %v1956 = vpack.c.b16 %v1452, %v1448
    %v1957 = vpack.c.b16 %v1453, %v1449
    %v1958 = vpack.c.b16 %v1454, %v1450
    %v1959 = vpack.c.b16 %v1455, %v1451
    %v1960 = vpack.c.b16 %v1460, %v1456
    %v1961 = vpack.c.b16 %v1461, %v1457
    %v1962 = vpack.c.b16 %v1462, %v1458
    %v1963 = vpack.c.b16 %v1463, %v1459
    %v1964 = vpack.c.b16 %v1468, %v1464
    %v1965 = vpack.c.b16 %v1469, %v1465
    %v1966 = vpack.c.b16 %v1470, %v1466
    %v1967 = vpack.c.b16 %v1471, %v1467
    %v1968 = vpack.c.b16 %v1476, %v1472
    %v1969 = vpack.c.b16 %v1477, %v1473
    %v1970 = vpack.c.b16 %v1478, %v1474
    %v1971 = vpack.c.b16 %v1479, %v1475
    %v1972 = vpack.c.b16 %v1484, %v1480
    %v1973 = vpack.c.b16 %v1485, %v1481
    %v1974 = vpack.c.b16 %v1486, %v1482
    %v1975 = vpack.c.b16 %v1487, %v1483
    %v1976 = vpack.c.b16 %v1492, %v1488
    %v1977 = vpack.c.b16 %v1493, %v1489
    %v1978 = vpack.c.b16 %v1494, %v1490
    %v1979 = vpack.c.b16 %v1495, %v1491
    %v1980 = vpack.c.b16 %v1500, %v1496
    %v1981 = vpack.c.b16 %v1501, %v1497
    %v1982 = vpack.c.b16 %v1502, %v1498
    %v1983 = vpack.c.b16 %v1503, %v1499
    %v1984 = vpack.c.b16 %v1508, %v1504
    %v1985 = vpack.c.b16 %v1509, %v1505
    %v1986 = vpack.c.b16 %v1510, %v1506
    %v1987 = vpack.c.b16 %v1511, %v1507
    %v1988 = vpack.c.b16 %v1516, %v1512
    %v1989 = vpack.c.b16 %v1517, %v1513
    %v1990 = vpack.c.b16 %v1518, %v1514
    %v1991 = vpack.c.b16 %v1519, %v1515
    %v1992 = vpack.c.b16 %v1524, %v1520
    %v1993 = vpack.c.b16 %v1525, %v1521
    %v1994 = vpack.c.b16 %v1526, %v1522
    %v1995 = vpack.c.b16 %v1527, %v1523
    %v1996 = vpack.c.b16 %v1532, %v1528
    %v1997 = vpack.c.b16 %v1533, %v1529
    %v1998 = vpack.c.b16 %v1534, %v1530
    %v1999 = vpack.c.b16 %v1535, %v1531
    %v2000 = vpack.c.b16 %v1540, %v1536
    %v2001 = vpack.c.b16 %v1541, %v1537
    %v2002 = vpack.c.b16 %v1542, %v1538
    %v2003 = vpack.c.b16 %v1543, %v1539
    %v2004 = vpack.c.b16 %v1548, %v1544
    %v2005 = vpack.c.b16 %v1549, %v1545
    %v2006 = vpack.c.b16 %v1550, %v1546
    %v2007 = vpack.c.b16 %v1551, %v1547
    %v2008 = vpack.c.b16 %v1556, %v1552
    %v2009 = vpack.c.b16 %v1557, %v1553
    %v2010 = vpack.c.b16 %v1558, %v1554
    %v2011 = vpack.c.b16 %v1559, %v1555
    %v2012 = vpack.c.b16 %v1564, %v1560
    %v2013 = vpack.c.b16 %v1565, %v1561
    %v2014 = vpack.c.b16 %v1566, %v1562
    %v2015 = vpack.c.b16 %v1567, %v1563
    %v2016 = vpack.c.b16 %v1572, %v1568
    %v2017 = vpack.c.b16 %v1573, %v1569
    %v2018 = vpack.c.b16 %v1574, %v1570
    %v2019 = vpack.c.b16 %v1575, %v1571
    %v2020 = vpack.c.b16 %v1580, %v1576
    %v2021 = vpack.c.b16 %v1581, %v1577
    %v2022 = vpack.c.b16 %v1582, %v1578
    %v2023 = vpack.c.b16 %v1583, %v1579
    %v2024 = vpack.c.b16 %v1588, %v1584
    %v2025 = vpack.c.b16 %v1589, %v1585
    %v2026 = vpack.c.b16 %v1590, %v1586
    %v2027 = vpack.c.b16 %v1591, %v1587
    %v2028 = vpack.c.b16 %v1596, %v1592
    %v2029 = vpack.c.b16 %v1597, %v1593
    %v2030 = vpack.c.b16 %v1598, %v1594
    %v2031 = vpack.c.b16 %v1599, %v1595
    %v2032 = vpack.c.b16 %v1604, %v1600
    %v2033 = vpack.c.b16 %v1605, %v1601
    %v2034 = vpack.c.b16 %v1606, %v1602
    %v2035 = vpack.c.b16 %v1607, %v1603
    %v2036 = vpack.c.b16 %v1612, %v1608
    %v2037 = vpack.c.b16 %v1613, %v1609
    %v2038 = vpack.c.b16 %v1614, %v1610
    %v2039 = vpack.c.b16 %v1615, %v1611
    %v2040 = vpack.c.b16 %v1620, %v1616
    %v2041 = vpack.c.b16 %v1621, %v1617
    %v2042 = vpack.c.b16 %v1622, %v1618
    %v2043 = vpack.c.b16 %v1623, %v1619
    %v2044 = vpack.c.b16 %v1628, %v1624
    %v2045 = vpack.c.b16 %v1629, %v1625
    %v2046 = vpack.c.b16 %v1630, %v1626
    %v2047 = vpack.c.b16 %v1631, %v1627
    %v2048 = vpack.c.b16 %v1636, %v1632
    %v2049 = vpack.c.b16 %v1637, %v1633
    %v2050 = vpack.c.b16 %v1638, %v1634
    %v2051 = vpack.c.b16 %v1639, %v1635
    %v2052 = vpack.c.b16 %v1644, %v1640
    %v2053 = vpack.c.b16 %v1645, %v1641
    %v2054 = vpack.c.b16 %v1646, %v1642
    %v2055 = vpack.c.b16 %v1647, %v1643
    %v2056 = vpack.c.b16 %v1652, %v1648
    %v2057 = vpack.c.b16 %v1653, %v1649
    %v2058 = vpack.c.b16 %v1654, %v1650
    %v2059 = vpack.c.b16 %v1655, %v1651
    %v2060 = vpack.c.b16 %v1660, %v1656
    %v2061 = vpack.c.b16 %v1661, %v1657
    %v2062 = vpack.c.b16 %v1662, %v1658
    %v2063 = vpack.c.b16 %v1663, %v1659
    %v2064 = vpack.c.b16 %v1668, %v1664
    %v2065 = vpack.c.b16 %v1669, %v1665
    %v2066 = vpack.c.b16 %v1670, %v1666
    %v2067 = vpack.c.b16 %v1671, %v1667
    %v2068 = vpack.c.b16 %v1676, %v1672
    %v2069 = vpack.c.b16 %v1677, %v1673
    %v2070 = vpack.c.b16 %v1678, %v1674
    %v2071 = vpack.c.b16 %v1679, %v1675
    %v2072 = vpack.c.b16 %v1684, %v1680
    %v2073 = vpack.c.b16 %v1685, %v1681
    %v2074 = vpack.c.b16 %v1686, %v1682
    %v2075 = vpack.c.b16 %v1687, %v1683
    %v2076 = vpack.c.b16 %v1692, %v1688
    %v2077 = vpack.c.b16 %v1693, %v1689
    %v2078 = vpack.c.b16 %v1694, %v1690
    %v2079 = vpack.c.b16 %v1695, %v1691
    %2464 = vmatprep.subr.bf16.mxu0 %v1725
    %2465 = vmatpush1.bf16.msra.mxu0 %v1724
    %2466 = vmatprep.subr.bf16.mxu0 %v1721
    %2467 = vmatpush1.bf16.msra.mxu0 %v1720
    %2468 = vmatprep.subr.bf16.mxu0 %v1717
    %2469 = vmatpush1.bf16.msra.mxu0 %v1716
    %2470 = vmatprep.subr.bf16.mxu0 %v1713
    %2471 = vmatpush1.bf16.msra.mxu0 %v1712
    %2472 = vmatprep.subr.bf16.mxu0 %v1709
    %2473 = vmatpush1.bf16.msra.mxu0 %v1708
    %2474 = vmatprep.subr.bf16.mxu0 %v1705
    %2475 = vmatpush1.bf16.msra.mxu0 %v1704
    %2476 = vmatprep.subr.bf16.mxu0 %v1701
    %2477 = vmatpush1.bf16.msra.mxu0 %v1700
    %2478 = vmatprep.subr.bf16.mxu0 %v1697
    %2479 = vmatpush1.bf16.msra.mxu0 %v1696
    %2480 = vmatprep.subr.bf16.mxu0 %v1757
    %2481 = vmatpush2.bf16.msra.mxu0 %v1756
    %2482 = vmatprep.subr.bf16.mxu0 %v1753
    %2483 = vmatpush2.bf16.msra.mxu0 %v1752
    %2484 = vmatprep.subr.bf16.mxu0 %v1749
    %2485 = vmatpush2.bf16.msra.mxu0 %v1748
    %2486 = vmatprep.subr.bf16.mxu0 %v1745
    %2487 = vmatpush2.bf16.msra.mxu0 %v1744
    %2488 = vmatprep.subr.bf16.mxu0 %v1741
    %2489 = vmatpush2.bf16.msra.mxu0 %v1740
    %2490 = vmatprep.subr.bf16.mxu0 %v1737
    %2491 = vmatpush2.bf16.msra.mxu0 %v1736
    %2492 = vmatprep.subr.bf16.mxu0 %v1733
    %2493 = vmatpush2.bf16.msra.mxu0 %v1732
    %2494 = vmatprep.subr.bf16.mxu0 %v1729
    %2495 = vmatpush2.bf16.msra.mxu0 %v1728
    %2496 = vmatprep.mubr.bf16.mxu0 %v127
    %2497 = vmatmul.mubr.bf16.gmra.mxu0 %v126
    %v2498 = vpop.f32.mrf.mxu0
    %v2499 = vadd.f32 %v527, %v2498
    %v2500 = vpop.f32.mrf.mxu0
    %v2501 = vadd.f32 %v531, %v2500
    %v2502 = vpop.f32.mrf.mxu0
    %v2503 = vpop.f32.mrf.mxu0
    %2504 = vdwg.mxu0
    %2505 = vmatprep.subr.bf16.mxu0 %v1789
    %2506 = vmatpush1.bf16.msra.mxu0 %v1788
    %2507 = vmatprep.subr.bf16.mxu0 %v1785
    %2508 = vmatpush1.bf16.msra.mxu0 %v1784
    %2509 = vmatprep.subr.bf16.mxu0 %v1781
    %2510 = vmatpush1.bf16.msra.mxu0 %v1780
    %2511 = vmatprep.subr.bf16.mxu0 %v1777
    %2512 = vmatpush1.bf16.msra.mxu0 %v1776
    %2513 = vmatprep.subr.bf16.mxu0 %v1773
    %2514 = vmatpush1.bf16.msra.mxu0 %v1772
    %2515 = vmatprep.subr.bf16.mxu0 %v1769
    %2516 = vmatpush1.bf16.msra.mxu0 %v1768
    %2517 = vmatprep.subr.bf16.mxu0 %v1765
    %2518 = vmatpush1.bf16.msra.mxu0 %v1764
    %2519 = vmatprep.subr.bf16.mxu0 %v1761
    %2520 = vmatpush1.bf16.msra.mxu0 %v1760
    %2521 = vmatprep.subr.bf16.mxu0 %v1821
    %2522 = vmatpush2.bf16.msra.mxu0 %v1820
    %2523 = vmatprep.subr.bf16.mxu0 %v1817
    %2524 = vmatpush2.bf16.msra.mxu0 %v1816
    %2525 = vmatprep.subr.bf16.mxu0 %v1813
    %2526 = vmatpush2.bf16.msra.mxu0 %v1812
    %2527 = vmatprep.subr.bf16.mxu0 %v1809
    %2528 = vmatpush2.bf16.msra.mxu0 %v1808
    %2529 = vmatprep.subr.bf16.mxu0 %v1805
    %2530 = vmatpush2.bf16.msra.mxu0 %v1804
    %2531 = vmatprep.subr.bf16.mxu0 %v1801
    %2532 = vmatpush2.bf16.msra.mxu0 %v1800
    %2533 = vmatprep.subr.bf16.mxu0 %v1797
    %2534 = vmatpush2.bf16.msra.mxu0 %v1796
    %2535 = vmatprep.subr.bf16.mxu0 %v1793
    %2536 = vmatpush2.bf16.msra.mxu0 %v1792
    %2537 = vmatprep.mubr.bf16.mxu0 %v129
    %2538 = vmatmul.mubr.bf16.gmra.mxu0 %v128
    %v2539 = vpop.f32.mrf.mxu0
    %v2540 = vadd.f32 %v2499, %v2539
    %v2541 = vpop.f32.mrf.mxu0
    %v2542 = vadd.f32 %v2501, %v2541
    %v2543 = vpop.f32.mrf.mxu0
    %v2544 = vpop.f32.mrf.mxu0
    %2545 = vdwg.mxu0
    %2546 = vmatprep.subr.bf16.mxu0 %v1853
    %2547 = vmatpush1.bf16.msra.mxu0 %v1852
    %2548 = vmatprep.subr.bf16.mxu0 %v1849
    %2549 = vmatpush1.bf16.msra.mxu0 %v1848
    %2550 = vmatprep.subr.bf16.mxu0 %v1845
    %2551 = vmatpush1.bf16.msra.mxu0 %v1844
    %2552 = vmatprep.subr.bf16.mxu0 %v1841
    %2553 = vmatpush1.bf16.msra.mxu0 %v1840
    %2554 = vmatprep.subr.bf16.mxu0 %v1837
    %2555 = vmatpush1.bf16.msra.mxu0 %v1836
    %2556 = vmatprep.subr.bf16.mxu0 %v1833
    %2557 = vmatpush1.bf16.msra.mxu0 %v1832
    %2558 = vmatprep.subr.bf16.mxu0 %v1829
    %2559 = vmatpush1.bf16.msra.mxu0 %v1828
    %2560 = vmatprep.subr.bf16.mxu0 %v1825
    %2561 = vmatpush1.bf16.msra.mxu0 %v1824
    %2562 = vmatprep.subr.bf16.mxu0 %v1885
    %2563 = vmatpush2.bf16.msra.mxu0 %v1884
    %2564 = vmatprep.subr.bf16.mxu0 %v1881
    %2565 = vmatpush2.bf16.msra.mxu0 %v1880
    %2566 = vmatprep.subr.bf16.mxu0 %v1877
    %2567 = vmatpush2.bf16.msra.mxu0 %v1876
    %2568 = vmatprep.subr.bf16.mxu0 %v1873
    %2569 = vmatpush2.bf16.msra.mxu0 %v1872
    %2570 = vmatprep.subr.bf16.mxu0 %v1869
    %2571 = vmatpush2.bf16.msra.mxu0 %v1868
    %2572 = vmatprep.subr.bf16.mxu0 %v1865
    %2573 = vmatpush2.bf16.msra.mxu0 %v1864
    %2574 = vmatprep.subr.bf16.mxu0 %v1861
    %2575 = vmatpush2.bf16.msra.mxu0 %v1860
    %2576 = vmatprep.subr.bf16.mxu0 %v1857
    %2577 = vmatpush2.bf16.msra.mxu0 %v1856
    %2578 = vmatprep.mubr.bf16.mxu0 %v131
    %2579 = vmatmul.mubr.bf16.gmra.mxu0 %v130
    %v2580 = vpop.f32.mrf.mxu0
    %v2581 = vadd.f32 %v2540, %v2580
    %v2582 = vpop.f32.mrf.mxu0
    %v2583 = vadd.f32 %v2542, %v2582
    %v2584 = vpop.f32.mrf.mxu0
    %v2585 = vpop.f32.mrf.mxu0
    %2586 = vdwg.mxu0
    %2587 = vmatprep.subr.bf16.mxu0 %v1917
    %2588 = vmatpush1.bf16.msra.mxu0 %v1916
    %2589 = vmatprep.subr.bf16.mxu0 %v1913
    %2590 = vmatpush1.bf16.msra.mxu0 %v1912
    %2591 = vmatprep.subr.bf16.mxu0 %v1909
    %2592 = vmatpush1.bf16.msra.mxu0 %v1908
    %2593 = vmatprep.subr.bf16.mxu0 %v1905
    %2594 = vmatpush1.bf16.msra.mxu0 %v1904
    %2595 = vmatprep.subr.bf16.mxu0 %v1901
    %2596 = vmatpush1.bf16.msra.mxu0 %v1900
    %2597 = vmatprep.subr.bf16.mxu0 %v1897
    %2598 = vmatpush1.bf16.msra.mxu0 %v1896
    %2599 = vmatprep.subr.bf16.mxu0 %v1893
    %2600 = vmatpush1.bf16.msra.mxu0 %v1892
    %2601 = vmatprep.subr.bf16.mxu0 %v1889
    %2602 = vmatpush1.bf16.msra.mxu0 %v1888
    %2603 = vmatprep.subr.bf16.mxu0 %v1949
    %2604 = vmatpush2.bf16.msra.mxu0 %v1948
    %2605 = vmatprep.subr.bf16.mxu0 %v1945
    %2606 = vmatpush2.bf16.msra.mxu0 %v1944
    %2607 = vmatprep.subr.bf16.mxu0 %v1941
    %2608 = vmatpush2.bf16.msra.mxu0 %v1940
    %2609 = vmatprep.subr.bf16.mxu0 %v1937
    %2610 = vmatpush2.bf16.msra.mxu0 %v1936
    %2611 = vmatprep.subr.bf16.mxu0 %v1933
    %2612 = vmatpush2.bf16.msra.mxu0 %v1932
    %2613 = vmatprep.subr.bf16.mxu0 %v1929
    %2614 = vmatpush2.bf16.msra.mxu0 %v1928
    %2615 = vmatprep.subr.bf16.mxu0 %v1925
    %2616 = vmatpush2.bf16.msra.mxu0 %v1924
    %2617 = vmatprep.subr.bf16.mxu0 %v1921
    %2618 = vmatpush2.bf16.msra.mxu0 %v1920
    %2619 = vmatprep.mubr.bf16.mxu0 %v133
    %2620 = vmatmul.mubr.bf16.gmra.mxu0 %v132
    %v2621 = vpop.f32.mrf.mxu0
    %v2622 = vadd.f32 %v2581, %v2621
    %v2623 = vpop.f32.mrf.mxu0
    %v2624 = vadd.f32 %v2583, %v2623
    %v2625 = vpop.f32.mrf.mxu0
    %v2626 = vpop.f32.mrf.mxu0
    %2627 = vdwg.mxu0
    %2628 = vmatprep.subr.bf16.mxu0 %v1981
    %2629 = vmatpush1.bf16.msra.mxu0 %v1980
    %2630 = vmatprep.subr.bf16.mxu0 %v1977
    %2631 = vmatpush1.bf16.msra.mxu0 %v1976
    %2632 = vmatprep.subr.bf16.mxu0 %v1973
    %2633 = vmatpush1.bf16.msra.mxu0 %v1972
    %2634 = vmatprep.subr.bf16.mxu0 %v1969
    %2635 = vmatpush1.bf16.msra.mxu0 %v1968
    %2636 = vmatprep.subr.bf16.mxu0 %v1965
    %2637 = vmatpush1.bf16.msra.mxu0 %v1964
    %2638 = vmatprep.subr.bf16.mxu0 %v1961
    %2639 = vmatpush1.bf16.msra.mxu0 %v1960
    %2640 = vmatprep.subr.bf16.mxu0 %v1957
    %2641 = vmatpush1.bf16.msra.mxu0 %v1956
    %2642 = vmatprep.subr.bf16.mxu0 %v1953
    %2643 = vmatpush1.bf16.msra.mxu0 %v1952
    %2644 = vmatprep.subr.bf16.mxu0 %v2013
    %2645 = vmatpush2.bf16.msra.mxu0 %v2012
    %2646 = vmatprep.subr.bf16.mxu0 %v2009
    %2647 = vmatpush2.bf16.msra.mxu0 %v2008
    %2648 = vmatprep.subr.bf16.mxu0 %v2005
    %2649 = vmatpush2.bf16.msra.mxu0 %v2004
    %2650 = vmatprep.subr.bf16.mxu0 %v2001
    %2651 = vmatpush2.bf16.msra.mxu0 %v2000
    %2652 = vmatprep.subr.bf16.mxu0 %v1997
    %2653 = vmatpush2.bf16.msra.mxu0 %v1996
    %2654 = vmatprep.subr.bf16.mxu0 %v1993
    %2655 = vmatpush2.bf16.msra.mxu0 %v1992
    %2656 = vmatprep.subr.bf16.mxu0 %v1989
    %2657 = vmatpush2.bf16.msra.mxu0 %v1988
    %2658 = vmatprep.subr.bf16.mxu0 %v1985
    %2659 = vmatpush2.bf16.msra.mxu0 %v1984
    %2660 = vmatprep.mubr.bf16.mxu0 %v135
    %2661 = vmatmul.mubr.bf16.gmra.mxu0 %v134
    %v2662 = vpop.f32.mrf.mxu0
    %v2663 = vadd.f32 %v2622, %v2662
    %v2664 = vpop.f32.mrf.mxu0
    %v2665 = vadd.f32 %v2624, %v2664
    %v2666 = vpop.f32.mrf.mxu0
    %v2667 = vpop.f32.mrf.mxu0
    %2668 = vdwg.mxu0
    %2669 = vmatprep.subr.bf16.mxu0 %v2045
    %2670 = vmatpush1.bf16.msra.mxu0 %v2044
    %2671 = vmatprep.subr.bf16.mxu0 %v2041
    %2672 = vmatpush1.bf16.msra.mxu0 %v2040
    %2673 = vmatprep.subr.bf16.mxu0 %v2037
    %2674 = vmatpush1.bf16.msra.mxu0 %v2036
    %2675 = vmatprep.subr.bf16.mxu0 %v2033
    %2676 = vmatpush1.bf16.msra.mxu0 %v2032
    %2677 = vmatprep.subr.bf16.mxu0 %v2029
    %2678 = vmatpush1.bf16.msra.mxu0 %v2028
    %2679 = vmatprep.subr.bf16.mxu0 %v2025
    %2680 = vmatpush1.bf16.msra.mxu0 %v2024
    %2681 = vmatprep.subr.bf16.mxu0 %v2021
    %2682 = vmatpush1.bf16.msra.mxu0 %v2020
    %2683 = vmatprep.subr.bf16.mxu0 %v2017
    %2684 = vmatpush1.bf16.msra.mxu0 %v2016
    %2685 = vmatprep.subr.bf16.mxu0 %v2077
    %2686 = vmatpush2.bf16.msra.mxu0 %v2076
    %2687 = vmatprep.subr.bf16.mxu0 %v2073
    %2688 = vmatpush2.bf16.msra.mxu0 %v2072
    %2689 = vmatprep.subr.bf16.mxu0 %v2069
    %2690 = vmatpush2.bf16.msra.mxu0 %v2068
    %2691 = vmatprep.subr.bf16.mxu0 %v2065
    %2692 = vmatpush2.bf16.msra.mxu0 %v2064
    %2693 = vmatprep.subr.bf16.mxu0 %v2061
    %2694 = vmatpush2.bf16.msra.mxu0 %v2060
    %2695 = vmatprep.subr.bf16.mxu0 %v2057
    %2696 = vmatpush2.bf16.msra.mxu0 %v2056
    %2697 = vmatprep.subr.bf16.mxu0 %v2053
    %2698 = vmatpush2.bf16.msra.mxu0 %v2052
    %2699 = vmatprep.subr.bf16.mxu0 %v2049
    %2700 = vmatpush2.bf16.msra.mxu0 %v2048
    %2701 = vmatprep.mubr.bf16.mxu0 %v137
    %2702 = vmatmul.mubr.bf16.gmra.mxu0 %v136
    %v2703 = vpop.f32.mrf.mxu0
    %v2704 = vadd.f32 %v2663, %v2703
    %v2705 = vpop.f32.mrf.mxu0
    %v2706 = vadd.f32 %v2665, %v2705
    %v2707 = vpop.f32.mrf.mxu0
    %v2708 = vpop.f32.mrf.mxu0
    %2709 = vdwg.mxu0
    %2710 = vmatprep.subr.bf16.mxu0 %v1727
    %2711 = vmatpush1.bf16.msra.mxu0 %v1726
    %2712 = vmatprep.subr.bf16.mxu0 %v1723
    %2713 = vmatpush1.bf16.msra.mxu0 %v1722
    %2714 = vmatprep.subr.bf16.mxu0 %v1719
    %2715 = vmatpush1.bf16.msra.mxu0 %v1718
    %2716 = vmatprep.subr.bf16.mxu0 %v1715
    %2717 = vmatpush1.bf16.msra.mxu0 %v1714
    %2718 = vmatprep.subr.bf16.mxu0 %v1711
    %2719 = vmatpush1.bf16.msra.mxu0 %v1710
    %2720 = vmatprep.subr.bf16.mxu0 %v1707
    %2721 = vmatpush1.bf16.msra.mxu0 %v1706
    %2722 = vmatprep.subr.bf16.mxu0 %v1703
    %2723 = vmatpush1.bf16.msra.mxu0 %v1702
    %2724 = vmatprep.subr.bf16.mxu0 %v1699
    %2725 = vmatpush1.bf16.msra.mxu0 %v1698
    %2726 = vmatprep.subr.bf16.mxu0 %v1759
    %2727 = vmatpush2.bf16.msra.mxu0 %v1758
    %2728 = vmatprep.subr.bf16.mxu0 %v1755
    %2729 = vmatpush2.bf16.msra.mxu0 %v1754
    %2730 = vmatprep.subr.bf16.mxu0 %v1751
    %2731 = vmatpush2.bf16.msra.mxu0 %v1750
    %2732 = vmatprep.subr.bf16.mxu0 %v1747
    %2733 = vmatpush2.bf16.msra.mxu0 %v1746
    %2734 = vmatprep.subr.bf16.mxu0 %v1743
    %2735 = vmatpush2.bf16.msra.mxu0 %v1742
    %2736 = vmatprep.subr.bf16.mxu0 %v1739
    %2737 = vmatpush2.bf16.msra.mxu0 %v1738
    %2738 = vmatprep.subr.bf16.mxu0 %v1735
    %2739 = vmatpush2.bf16.msra.mxu0 %v1734
    %2740 = vmatprep.subr.bf16.mxu0 %v1731
    %2741 = vmatpush2.bf16.msra.mxu0 %v1730
    %2742 = vmatprep.mubr.bf16.mxu0 %v127
    %2743 = vmatmul.mubr.bf16.gmra.mxu0 %v126
    %v2744 = vpop.f32.mrf.mxu0
    %v2745 = vadd.f32 %v535, %v2744
    %v2746 = vpop.f32.mrf.mxu0
    %v2747 = vadd.f32 %v539, %v2746
    %v2748 = vpop.f32.mrf.mxu0
    %v2749 = vpop.f32.mrf.mxu0
    %2750 = vdwg.mxu0
    %2751 = vmatprep.subr.bf16.mxu0 %v1791
    %2752 = vmatpush1.bf16.msra.mxu0 %v1790
    %2753 = vmatprep.subr.bf16.mxu0 %v1787
    %2754 = vmatpush1.bf16.msra.mxu0 %v1786
    %2755 = vmatprep.subr.bf16.mxu0 %v1783
    %2756 = vmatpush1.bf16.msra.mxu0 %v1782
    %2757 = vmatprep.subr.bf16.mxu0 %v1779
    %2758 = vmatpush1.bf16.msra.mxu0 %v1778
    %2759 = vmatprep.subr.bf16.mxu0 %v1775
    %2760 = vmatpush1.bf16.msra.mxu0 %v1774
    %2761 = vmatprep.subr.bf16.mxu0 %v1771
    %2762 = vmatpush1.bf16.msra.mxu0 %v1770
    %2763 = vmatprep.subr.bf16.mxu0 %v1767
    %2764 = vmatpush1.bf16.msra.mxu0 %v1766
    %2765 = vmatprep.subr.bf16.mxu0 %v1763
    %2766 = vmatpush1.bf16.msra.mxu0 %v1762
    %2767 = vmatprep.subr.bf16.mxu0 %v1823
    %2768 = vmatpush2.bf16.msra.mxu0 %v1822
    %2769 = vmatprep.subr.bf16.mxu0 %v1819
    %2770 = vmatpush2.bf16.msra.mxu0 %v1818
    %2771 = vmatprep.subr.bf16.mxu0 %v1815
    %2772 = vmatpush2.bf16.msra.mxu0 %v1814
    %2773 = vmatprep.subr.bf16.mxu0 %v1811
    %2774 = vmatpush2.bf16.msra.mxu0 %v1810
    %2775 = vmatprep.subr.bf16.mxu0 %v1807
    %2776 = vmatpush2.bf16.msra.mxu0 %v1806
    %2777 = vmatprep.subr.bf16.mxu0 %v1803
    %2778 = vmatpush2.bf16.msra.mxu0 %v1802
    %2779 = vmatprep.subr.bf16.mxu0 %v1799
    %2780 = vmatpush2.bf16.msra.mxu0 %v1798
    %2781 = vmatprep.subr.bf16.mxu0 %v1795
    %2782 = vmatpush2.bf16.msra.mxu0 %v1794
    %2783 = vmatprep.mubr.bf16.mxu0 %v129
    %2784 = vmatmul.mubr.bf16.gmra.mxu0 %v128
    %v2785 = vpop.f32.mrf.mxu0
    %v2786 = vadd.f32 %v2745, %v2785
    %v2787 = vpop.f32.mrf.mxu0
    %v2788 = vadd.f32 %v2747, %v2787
    %v2789 = vpop.f32.mrf.mxu0
    %v2790 = vpop.f32.mrf.mxu0
    %2791 = vdwg.mxu0
    %2792 = vmatprep.subr.bf16.mxu0 %v1855
    %2793 = vmatpush1.bf16.msra.mxu0 %v1854
    %2794 = vmatprep.subr.bf16.mxu0 %v1851
    %2795 = vmatpush1.bf16.msra.mxu0 %v1850
    %2796 = vmatprep.subr.bf16.mxu0 %v1847
    %2797 = vmatpush1.bf16.msra.mxu0 %v1846
    %2798 = vmatprep.subr.bf16.mxu0 %v1843
    %2799 = vmatpush1.bf16.msra.mxu0 %v1842
    %2800 = vmatprep.subr.bf16.mxu0 %v1839
    %2801 = vmatpush1.bf16.msra.mxu0 %v1838
    %2802 = vmatprep.subr.bf16.mxu0 %v1835
    %2803 = vmatpush1.bf16.msra.mxu0 %v1834
    %2804 = vmatprep.subr.bf16.mxu0 %v1831
    %2805 = vmatpush1.bf16.msra.mxu0 %v1830
    %2806 = vmatprep.subr.bf16.mxu0 %v1827
    %2807 = vmatpush1.bf16.msra.mxu0 %v1826
    %2808 = vmatprep.subr.bf16.mxu0 %v1887
    %2809 = vmatpush2.bf16.msra.mxu0 %v1886
    %2810 = vmatprep.subr.bf16.mxu0 %v1883
    %2811 = vmatpush2.bf16.msra.mxu0 %v1882
    %2812 = vmatprep.subr.bf16.mxu0 %v1879
    %2813 = vmatpush2.bf16.msra.mxu0 %v1878
    %2814 = vmatprep.subr.bf16.mxu0 %v1875
    %2815 = vmatpush2.bf16.msra.mxu0 %v1874
    %2816 = vmatprep.subr.bf16.mxu0 %v1871
    %2817 = vmatpush2.bf16.msra.mxu0 %v1870
    %2818 = vmatprep.subr.bf16.mxu0 %v1867
    %2819 = vmatpush2.bf16.msra.mxu0 %v1866
    %2820 = vmatprep.subr.bf16.mxu0 %v1863
    %2821 = vmatpush2.bf16.msra.mxu0 %v1862
    %2822 = vmatprep.subr.bf16.mxu0 %v1859
    %2823 = vmatpush2.bf16.msra.mxu0 %v1858
    %2824 = vmatprep.mubr.bf16.mxu0 %v131
    %2825 = vmatmul.mubr.bf16.gmra.mxu0 %v130
    %v2826 = vpop.f32.mrf.mxu0
    %v2827 = vadd.f32 %v2786, %v2826
    %v2828 = vpop.f32.mrf.mxu0
    %v2829 = vadd.f32 %v2788, %v2828
    %v2830 = vpop.f32.mrf.mxu0
    %v2831 = vpop.f32.mrf.mxu0
    %2832 = vdwg.mxu0
    %2833 = vmatprep.subr.bf16.mxu0 %v1919
    %2834 = vmatpush1.bf16.msra.mxu0 %v1918
    %2835 = vmatprep.subr.bf16.mxu0 %v1915
    %2836 = vmatpush1.bf16.msra.mxu0 %v1914
    %2837 = vmatprep.subr.bf16.mxu0 %v1911
    %2838 = vmatpush1.bf16.msra.mxu0 %v1910
    %2839 = vmatprep.subr.bf16.mxu0 %v1907
    %2840 = vmatpush1.bf16.msra.mxu0 %v1906
    %2841 = vmatprep.subr.bf16.mxu0 %v1903
    %2842 = vmatpush1.bf16.msra.mxu0 %v1902
    %2843 = vmatprep.subr.bf16.mxu0 %v1899
    %2844 = vmatpush1.bf16.msra.mxu0 %v1898
    %2845 = vmatprep.subr.bf16.mxu0 %v1895
    %2846 = vmatpush1.bf16.msra.mxu0 %v1894
    %2847 = vmatprep.subr.bf16.mxu0 %v1891
    %2848 = vmatpush1.bf16.msra.mxu0 %v1890
    %2849 = vmatprep.subr.bf16.mxu0 %v1951
    %2850 = vmatpush2.bf16.msra.mxu0 %v1950
    %2851 = vmatprep.subr.bf16.mxu0 %v1947
    %2852 = vmatpush2.bf16.msra.mxu0 %v1946
    %2853 = vmatprep.subr.bf16.mxu0 %v1943
    %2854 = vmatpush2.bf16.msra.mxu0 %v1942
    %2855 = vmatprep.subr.bf16.mxu0 %v1939
    %2856 = vmatpush2.bf16.msra.mxu0 %v1938
    %2857 = vmatprep.subr.bf16.mxu0 %v1935
    %2858 = vmatpush2.bf16.msra.mxu0 %v1934
    %2859 = vmatprep.subr.bf16.mxu0 %v1931
    %2860 = vmatpush2.bf16.msra.mxu0 %v1930
    %2861 = vmatprep.subr.bf16.mxu0 %v1927
    %2862 = vmatpush2.bf16.msra.mxu0 %v1926
    %2863 = vmatprep.subr.bf16.mxu0 %v1923
    %2864 = vmatpush2.bf16.msra.mxu0 %v1922
    %2865 = vmatprep.mubr.bf16.mxu0 %v133
    %2866 = vmatmul.mubr.bf16.gmra.mxu0 %v132
    %v2867 = vpop.f32.mrf.mxu0
    %v2868 = vadd.f32 %v2827, %v2867
    %v2869 = vpop.f32.mrf.mxu0
    %v2870 = vadd.f32 %v2829, %v2869
    %v2871 = vpop.f32.mrf.mxu0
    %v2872 = vpop.f32.mrf.mxu0
    %2873 = vdwg.mxu0
    %2874 = vmatprep.subr.bf16.mxu0 %v1983
    %2875 = vmatpush1.bf16.msra.mxu0 %v1982
    %2876 = vmatprep.subr.bf16.mxu0 %v1979
    %2877 = vmatpush1.bf16.msra.mxu0 %v1978
    %2878 = vmatprep.subr.bf16.mxu0 %v1975
    %2879 = vmatpush1.bf16.msra.mxu0 %v1974
    %2880 = vmatprep.subr.bf16.mxu0 %v1971
    %2881 = vmatpush1.bf16.msra.mxu0 %v1970
    %2882 = vmatprep.subr.bf16.mxu0 %v1967
    %2883 = vmatpush1.bf16.msra.mxu0 %v1966
    %2884 = vmatprep.subr.bf16.mxu0 %v1963
    %2885 = vmatpush1.bf16.msra.mxu0 %v1962
    %2886 = vmatprep.subr.bf16.mxu0 %v1959
    %2887 = vmatpush1.bf16.msra.mxu0 %v1958
    %2888 = vmatprep.subr.bf16.mxu0 %v1955
    %2889 = vmatpush1.bf16.msra.mxu0 %v1954
    %2890 = vmatprep.subr.bf16.mxu0 %v2015
    %2891 = vmatpush2.bf16.msra.mxu0 %v2014
    %2892 = vmatprep.subr.bf16.mxu0 %v2011
    %2893 = vmatpush2.bf16.msra.mxu0 %v2010
    %2894 = vmatprep.subr.bf16.mxu0 %v2007
    %2895 = vmatpush2.bf16.msra.mxu0 %v2006
    %2896 = vmatprep.subr.bf16.mxu0 %v2003
    %2897 = vmatpush2.bf16.msra.mxu0 %v2002
    %2898 = vmatprep.subr.bf16.mxu0 %v1999
    %2899 = vmatpush2.bf16.msra.mxu0 %v1998
    %2900 = vmatprep.subr.bf16.mxu0 %v1995
    %2901 = vmatpush2.bf16.msra.mxu0 %v1994
    %2902 = vmatprep.subr.bf16.mxu0 %v1991
    %2903 = vmatpush2.bf16.msra.mxu0 %v1990
    %2904 = vmatprep.subr.bf16.mxu0 %v1987
    %2905 = vmatpush2.bf16.msra.mxu0 %v1986
    %2906 = vmatprep.mubr.bf16.mxu0 %v135
    %2907 = vmatmul.mubr.bf16.gmra.mxu0 %v134
    %v2908 = vpop.f32.mrf.mxu0
    %v2909 = vadd.f32 %v2868, %v2908
    %v2910 = vpop.f32.mrf.mxu0
    %v2911 = vadd.f32 %v2870, %v2910
    %v2912 = vpop.f32.mrf.mxu0
    %v2913 = vpop.f32.mrf.mxu0
    %2914 = vdwg.mxu0
    %2915 = vmatprep.subr.bf16.mxu0 %v2047
    %2916 = vmatpush1.bf16.msra.mxu0 %v2046
    %2917 = vmatprep.subr.bf16.mxu0 %v2043
    %2918 = vmatpush1.bf16.msra.mxu0 %v2042
    %2919 = vmatprep.subr.bf16.mxu0 %v2039
    %2920 = vmatpush1.bf16.msra.mxu0 %v2038
    %2921 = vmatprep.subr.bf16.mxu0 %v2035
    %2922 = vmatpush1.bf16.msra.mxu0 %v2034
    %2923 = vmatprep.subr.bf16.mxu0 %v2031
    %2924 = vmatpush1.bf16.msra.mxu0 %v2030
    %2925 = vmatprep.subr.bf16.mxu0 %v2027
    %2926 = vmatpush1.bf16.msra.mxu0 %v2026
    %2927 = vmatprep.subr.bf16.mxu0 %v2023
    %2928 = vmatpush1.bf16.msra.mxu0 %v2022
    %2929 = vmatprep.subr.bf16.mxu0 %v2019
    %2930 = vmatpush1.bf16.msra.mxu0 %v2018
    %2931 = vmatprep.subr.bf16.mxu0 %v2079
    %2932 = vmatpush2.bf16.msra.mxu0 %v2078
    %2933 = vmatprep.subr.bf16.mxu0 %v2075
    %2934 = vmatpush2.bf16.msra.mxu0 %v2074
    %2935 = vmatprep.subr.bf16.mxu0 %v2071
    %2936 = vmatpush2.bf16.msra.mxu0 %v2070
    %2937 = vmatprep.subr.bf16.mxu0 %v2067
    %2938 = vmatpush2.bf16.msra.mxu0 %v2066
    %2939 = vmatprep.subr.bf16.mxu0 %v2063
    %2940 = vmatpush2.bf16.msra.mxu0 %v2062
    %2941 = vmatprep.subr.bf16.mxu0 %v2059
    %2942 = vmatpush2.bf16.msra.mxu0 %v2058
    %2943 = vmatprep.subr.bf16.mxu0 %v2055
    %2944 = vmatpush2.bf16.msra.mxu0 %v2054
    %2945 = vmatprep.subr.bf16.mxu0 %v2051
    %2946 = vmatpush2.bf16.msra.mxu0 %v2050
    %2947 = vmatprep.mubr.bf16.mxu0 %v137
    %2948 = vmatmul.mubr.bf16.gmra.mxu0 %v136
    %v2949 = vpop.f32.mrf.mxu0
    %v2950 = vadd.f32 %v2909, %v2949
    %v2951 = vpop.f32.mrf.mxu0
    %v2952 = vadd.f32 %v2911, %v2951
    %v2953 = vpop.f32.mrf.mxu0
    %v2954 = vpop.f32.mrf.mxu0
    %2955 = vdwg.mxu0
    %v2956 = vmax.f32 %v2704, 0.0
    %v2957 = vmax.f32 %v2706, 0.0
    %v2958 = vmax.f32 %v2950, 0.0
    %v2959 = vmax.f32 %v2952, 0.0
    %v2960 = vpack.c.bf16 %v2956, %v2956
    %v2961 = vpack.c.bf16 %v2957, %v2957
    %v2962 = vpack.c.bf16 %v2958, %v2958
    %v2963 = vpack.c.bf16 %v2959, %v2959
    %v2964 = vld [vmem:[#allocation7] sm:$0xff]
    %v2965 = vld [vmem:[#allocation7 + $0x8] sm:$0xff]
    %v2966 = vld [vmem:[#allocation7 + $0x10] sm:$0xff]
    %v2967 = vld [vmem:[#allocation7 + $0x18] sm:$0xff]
    %v2968 = vld [vmem:[#allocation7 + $0x20] sm:$0xff]
    %v2969 = vld [vmem:[#allocation7 + $0x28] sm:$0xff]
    %v2970 = vld [vmem:[#allocation7 + $0x30] sm:$0xff]
    %v2971 = vld [vmem:[#allocation7 + $0x38] sm:$0xff]
    %v2972 = vld [vmem:[#allocation7 + $0x40] sm:$0xff]
    %v2973 = vld [vmem:[#allocation7 + $0x48] sm:$0xff]
    %v2974 = vld [vmem:[#allocation7 + $0x50] sm:$0xff]
    %v2975 = vld [vmem:[#allocation7 + $0x58] sm:$0xff]
    %v2976 = vld [vmem:[#allocation7 + $0x60] sm:$0xff]
    %v2977 = vld [vmem:[#allocation7 + $0x68] sm:$0xff]
    %v2978 = vld [vmem:[#allocation7 + $0x70] sm:$0xff]
    %v2979 = vld [vmem:[#allocation7 + $0x78] sm:$0xff]
    %v2980 = vld [vmem:[#allocation7 + $0x80] sm:$0xff]
    %v2981 = vld [vmem:[#allocation7 + $0x88] sm:$0xff]
    %v2982 = vld [vmem:[#allocation7 + $0x90] sm:$0xff]
    %v2983 = vld [vmem:[#allocation7 + $0x98] sm:$0xff]
    %v2984 = vld [vmem:[#allocation7 + $0xa0] sm:$0xff]
    %v2985 = vld [vmem:[#allocation7 + $0xa8] sm:$0xff]
    %v2986 = vld [vmem:[#allocation7 + $0xb0] sm:$0xff]
    %v2987 = vld [vmem:[#allocation7 + $0xb8] sm:$0xff]
    %v2988 = vld [vmem:[#allocation7 + $0xc0] sm:$0xff]
    %v2989 = vld [vmem:[#allocation7 + $0xc8] sm:$0xff]
    %v2990 = vld [vmem:[#allocation7 + $0xd0] sm:$0xff]
    %v2991 = vld [vmem:[#allocation7 + $0xd8] sm:$0xff]
    %v2992 = vld [vmem:[#allocation7 + $0xe0] sm:$0xff]
    %v2993 = vld [vmem:[#allocation7 + $0xe8] sm:$0xff]
    %v2994 = vld [vmem:[#allocation7 + $0xf0] sm:$0xff]
    %v2995 = vld [vmem:[#allocation7 + $0xf8] sm:$0xff]
    %v2996 = vld [vmem:[#allocation7 + $0x100] sm:$0xff]
    %v2997 = vld [vmem:[#allocation7 + $0x108] sm:$0xff]
    %v2998 = vld [vmem:[#allocation7 + $0x110] sm:$0xff]
    %v2999 = vld [vmem:[#allocation7 + $0x118] sm:$0xff]
    %v3000 = vld [vmem:[#allocation7 + $0x120] sm:$0xff]
    %v3001 = vld [vmem:[#allocation7 + $0x128] sm:$0xff]
    %v3002 = vld [vmem:[#allocation7 + $0x130] sm:$0xff]
    %v3003 = vld [vmem:[#allocation7 + $0x138] sm:$0xff]
    %v3004 = vld [vmem:[#allocation7 + $0x140] sm:$0xff]
    %v3005 = vld [vmem:[#allocation7 + $0x148] sm:$0xff]
    %v3006 = vld [vmem:[#allocation7 + $0x150] sm:$0xff]
    %v3007 = vld [vmem:[#allocation7 + $0x158] sm:$0xff]
    %v3008 = vld [vmem:[#allocation7 + $0x160] sm:$0xff]
    %v3009 = vld [vmem:[#allocation7 + $0x168] sm:$0xff]
    %v3010 = vld [vmem:[#allocation7 + $0x170] sm:$0xff]
    %v3011 = vld [vmem:[#allocation7 + $0x178] sm:$0xff]
    %v3012 = vld [vmem:[#allocation7 + $0x180] sm:$0xff]
    %v3013 = vld [vmem:[#allocation7 + $0x188] sm:$0xff]
    %v3014 = vld [vmem:[#allocation7 + $0x190] sm:$0xff]
    %v3015 = vld [vmem:[#allocation7 + $0x198] sm:$0xff]
    %v3016 = vld [vmem:[#allocation7 + $0x1a0] sm:$0xff]
    %v3017 = vld [vmem:[#allocation7 + $0x1a8] sm:$0xff]
    %v3018 = vld [vmem:[#allocation7 + $0x1b0] sm:$0xff]
    %v3019 = vld [vmem:[#allocation7 + $0x1b8] sm:$0xff]
    %v3020 = vld [vmem:[#allocation7 + $0x1c0] sm:$0xff]
    %v3021 = vld [vmem:[#allocation7 + $0x1c8] sm:$0xff]
    %v3022 = vld [vmem:[#allocation7 + $0x1d0] sm:$0xff]
    %v3023 = vld [vmem:[#allocation7 + $0x1d8] sm:$0xff]
    %v3024 = vld [vmem:[#allocation7 + $0x1e0] sm:$0xff]
    %v3025 = vld [vmem:[#allocation7 + $0x1e8] sm:$0xff]
    %v3026 = vld [vmem:[#allocation7 + $0x1f0] sm:$0xff]
    %v3027 = vld [vmem:[#allocation7 + $0x1f8] sm:$0xff]
    %v3028 = vld [vmem:[#allocation9] sm:$0x3]
    %v3030 = vlaneseq
    %v3031 = vshrl.u32 %v3030, 7
    %v3032 = vsub.s32 0, %v3031
    %v3033 = vrot.slane %v3028, %v3032
    %v3034 = vlaneseq
    %v3035 = vshrl.u32 %v3034, 7
    %v3036 = vsub.s32 1, %v3035
    %v3037 = vrot.slane %v3028, %v3036
    %v3104 = vunpack.c.l.b16 %v2964
    %v3105 = vunpack.c.h.b16 %v2964
    %v3106 = vunpack.c.l.b16 %v2965
    %v3107 = vunpack.c.h.b16 %v2965
    %v3108 = vunpack.c.l.b16 %v2966
    %v3109 = vunpack.c.h.b16 %v2966
    %v3110 = vunpack.c.l.b16 %v2967
    %v3111 = vunpack.c.h.b16 %v2967
    %v3112 = vunpack.c.l.b16 %v2968
    %v3113 = vunpack.c.h.b16 %v2968
    %v3114 = vunpack.c.l.b16 %v2969
    %v3115 = vunpack.c.h.b16 %v2969
    %v3116 = vunpack.c.l.b16 %v2970
    %v3117 = vunpack.c.h.b16 %v2970
    %v3118 = vunpack.c.l.b16 %v2971
    %v3119 = vunpack.c.h.b16 %v2971
    %v3120 = vunpack.c.l.b16 %v2972
    %v3121 = vunpack.c.h.b16 %v2972
    %v3122 = vunpack.c.l.b16 %v2973
    %v3123 = vunpack.c.h.b16 %v2973
    %v3124 = vunpack.c.l.b16 %v2974
    %v3125 = vunpack.c.h.b16 %v2974
    %v3126 = vunpack.c.l.b16 %v2975
    %v3127 = vunpack.c.h.b16 %v2975
    %v3128 = vunpack.c.l.b16 %v2976
    %v3129 = vunpack.c.h.b16 %v2976
    %v3130 = vunpack.c.l.b16 %v2977
    %v3131 = vunpack.c.h.b16 %v2977
    %v3132 = vunpack.c.l.b16 %v2978
    %v3133 = vunpack.c.h.b16 %v2978
    %v3134 = vunpack.c.l.b16 %v2979
    %v3135 = vunpack.c.h.b16 %v2979
    %v3136 = vunpack.c.l.b16 %v2980
    %v3137 = vunpack.c.h.b16 %v2980
    %v3138 = vunpack.c.l.b16 %v2981
    %v3139 = vunpack.c.h.b16 %v2981
    %v3140 = vunpack.c.l.b16 %v2982
    %v3141 = vunpack.c.h.b16 %v2982
    %v3142 = vunpack.c.l.b16 %v2983
    %v3143 = vunpack.c.h.b16 %v2983
    %v3144 = vunpack.c.l.b16 %v2984
    %v3145 = vunpack.c.h.b16 %v2984
    %v3146 = vunpack.c.l.b16 %v2985
    %v3147 = vunpack.c.h.b16 %v2985
    %v3148 = vunpack.c.l.b16 %v2986
    %v3149 = vunpack.c.h.b16 %v2986
    %v3150 = vunpack.c.l.b16 %v2987
    %v3151 = vunpack.c.h.b16 %v2987
    %v3152 = vunpack.c.l.b16 %v2988
    %v3153 = vunpack.c.h.b16 %v2988
    %v3154 = vunpack.c.l.b16 %v2989
    %v3155 = vunpack.c.h.b16 %v2989
    %v3156 = vunpack.c.l.b16 %v2990
    %v3157 = vunpack.c.h.b16 %v2990
    %v3158 = vunpack.c.l.b16 %v2991
    %v3159 = vunpack.c.h.b16 %v2991
    %v3160 = vunpack.c.l.b16 %v2992
    %v3161 = vunpack.c.h.b16 %v2992
    %v3162 = vunpack.c.l.b16 %v2993
    %v3163 = vunpack.c.h.b16 %v2993
    %v3164 = vunpack.c.l.b16 %v2994
    %v3165 = vunpack.c.h.b16 %v2994
    %v3166 = vunpack.c.l.b16 %v2995
    %v3167 = vunpack.c.h.b16 %v2995
    %v3168 = vunpack.c.l.b16 %v2996
    %v3169 = vunpack.c.h.b16 %v2996
    %v3170 = vunpack.c.l.b16 %v2997
    %v3171 = vunpack.c.h.b16 %v2997
    %v3172 = vunpack.c.l.b16 %v2998
    %v3173 = vunpack.c.h.b16 %v2998
    %v3174 = vunpack.c.l.b16 %v2999
    %v3175 = vunpack.c.h.b16 %v2999
    %v3176 = vunpack.c.l.b16 %v3000
    %v3177 = vunpack.c.h.b16 %v3000
    %v3178 = vunpack.c.l.b16 %v3001
    %v3179 = vunpack.c.h.b16 %v3001
    %v3180 = vunpack.c.l.b16 %v3002
    %v3181 = vunpack.c.h.b16 %v3002
    %v3182 = vunpack.c.l.b16 %v3003
    %v3183 = vunpack.c.h.b16 %v3003
    %v3184 = vunpack.c.l.b16 %v3004
    %v3185 = vunpack.c.h.b16 %v3004
    %v3186 = vunpack.c.l.b16 %v3005
    %v3187 = vunpack.c.h.b16 %v3005
    %v3188 = vunpack.c.l.b16 %v3006
    %v3189 = vunpack.c.h.b16 %v3006
    %v3190 = vunpack.c.l.b16 %v3007
    %v3191 = vunpack.c.h.b16 %v3007
    %v3192 = vunpack.c.l.b16 %v3008
    %v3193 = vunpack.c.h.b16 %v3008
    %v3194 = vunpack.c.l.b16 %v3009
    %v3195 = vunpack.c.h.b16 %v3009
    %v3196 = vunpack.c.l.b16 %v3010
    %v3197 = vunpack.c.h.b16 %v3010
    %v3198 = vunpack.c.l.b16 %v3011
    %v3199 = vunpack.c.h.b16 %v3011
    %v3200 = vunpack.c.l.b16 %v3012
    %v3201 = vunpack.c.h.b16 %v3012
    %v3202 = vunpack.c.l.b16 %v3013
    %v3203 = vunpack.c.h.b16 %v3013
    %v3204 = vunpack.c.l.b16 %v3014
    %v3205 = vunpack.c.h.b16 %v3014
    %v3206 = vunpack.c.l.b16 %v3015
    %v3207 = vunpack.c.h.b16 %v3015
    %v3208 = vunpack.c.l.b16 %v3016
    %v3209 = vunpack.c.h.b16 %v3016
    %v3210 = vunpack.c.l.b16 %v3017
    %v3211 = vunpack.c.h.b16 %v3017
    %v3212 = vunpack.c.l.b16 %v3018
    %v3213 = vunpack.c.h.b16 %v3018
    %v3214 = vunpack.c.l.b16 %v3019
    %v3215 = vunpack.c.h.b16 %v3019
    %v3216 = vunpack.c.l.b16 %v3020
    %v3217 = vunpack.c.h.b16 %v3020
    %v3218 = vunpack.c.l.b16 %v3021
    %v3219 = vunpack.c.h.b16 %v3021
    %v3220 = vunpack.c.l.b16 %v3022
    %v3221 = vunpack.c.h.b16 %v3022
    %v3222 = vunpack.c.l.b16 %v3023
    %v3223 = vunpack.c.h.b16 %v3023
    %v3224 = vunpack.c.l.b16 %v3024
    %v3225 = vunpack.c.h.b16 %v3024
    %v3226 = vunpack.c.l.b16 %v3025
    %v3227 = vunpack.c.h.b16 %v3025
    %v3228 = vunpack.c.l.b16 %v3026
    %v3229 = vunpack.c.h.b16 %v3026
    %v3230 = vunpack.c.l.b16 %v3027
    %v3231 = vunpack.c.h.b16 %v3027
    %v3232 = vpack.c.b16 %v3106, %v3104
    %v3233 = vpack.c.b16 %v3107, %v3105
    %v3234 = vpack.c.b16 %v3110, %v3108
    %v3235 = vpack.c.b16 %v3111, %v3109
    %v3236 = vpack.c.b16 %v3114, %v3112
    %v3237 = vpack.c.b16 %v3115, %v3113
    %v3238 = vpack.c.b16 %v3118, %v3116
    %v3239 = vpack.c.b16 %v3119, %v3117
    %v3240 = vpack.c.b16 %v3122, %v3120
    %v3241 = vpack.c.b16 %v3123, %v3121
    %v3242 = vpack.c.b16 %v3126, %v3124
    %v3243 = vpack.c.b16 %v3127, %v3125
    %v3244 = vpack.c.b16 %v3130, %v3128
    %v3245 = vpack.c.b16 %v3131, %v3129
    %v3246 = vpack.c.b16 %v3134, %v3132
    %v3247 = vpack.c.b16 %v3135, %v3133
    %v3248 = vpack.c.b16 %v3138, %v3136
    %v3249 = vpack.c.b16 %v3139, %v3137
    %v3250 = vpack.c.b16 %v3142, %v3140
    %v3251 = vpack.c.b16 %v3143, %v3141
    %v3252 = vpack.c.b16 %v3146, %v3144
    %v3253 = vpack.c.b16 %v3147, %v3145
    %v3254 = vpack.c.b16 %v3150, %v3148
    %v3255 = vpack.c.b16 %v3151, %v3149
    %v3256 = vpack.c.b16 %v3154, %v3152
    %v3257 = vpack.c.b16 %v3155, %v3153
    %v3258 = vpack.c.b16 %v3158, %v3156
    %v3259 = vpack.c.b16 %v3159, %v3157
    %v3260 = vpack.c.b16 %v3162, %v3160
    %v3261 = vpack.c.b16 %v3163, %v3161
    %v3262 = vpack.c.b16 %v3166, %v3164
    %v3263 = vpack.c.b16 %v3167, %v3165
    %v3264 = vpack.c.b16 %v3170, %v3168
    %v3265 = vpack.c.b16 %v3171, %v3169
    %v3266 = vpack.c.b16 %v3174, %v3172
    %v3267 = vpack.c.b16 %v3175, %v3173
    %v3268 = vpack.c.b16 %v3178, %v3176
    %v3269 = vpack.c.b16 %v3179, %v3177
    %v3270 = vpack.c.b16 %v3182, %v3180
    %v3271 = vpack.c.b16 %v3183, %v3181
    %v3272 = vpack.c.b16 %v3186, %v3184
    %v3273 = vpack.c.b16 %v3187, %v3185
    %v3274 = vpack.c.b16 %v3190, %v3188
    %v3275 = vpack.c.b16 %v3191, %v3189
    %v3276 = vpack.c.b16 %v3194, %v3192
    %v3277 = vpack.c.b16 %v3195, %v3193
    %v3278 = vpack.c.b16 %v3198, %v3196
    %v3279 = vpack.c.b16 %v3199, %v3197
    %v3280 = vpack.c.b16 %v3202, %v3200
    %v3281 = vpack.c.b16 %v3203, %v3201
    %v3282 = vpack.c.b16 %v3206, %v3204
    %v3283 = vpack.c.b16 %v3207, %v3205
    %v3284 = vpack.c.b16 %v3210, %v3208
    %v3285 = vpack.c.b16 %v3211, %v3209
    %v3286 = vpack.c.b16 %v3214, %v3212
    %v3287 = vpack.c.b16 %v3215, %v3213
    %v3288 = vpack.c.b16 %v3218, %v3216
    %v3289 = vpack.c.b16 %v3219, %v3217
    %v3290 = vpack.c.b16 %v3222, %v3220
    %v3291 = vpack.c.b16 %v3223, %v3221
    %v3292 = vpack.c.b16 %v3226, %v3224
    %v3293 = vpack.c.b16 %v3227, %v3225
    %v3294 = vpack.c.b16 %v3230, %v3228
    %v3295 = vpack.c.b16 %v3231, %v3229
    %3360 = vmatprep.subr.bf16.mxu0 %v3247
    %3361 = vmatpush1.bf16.msra.mxu0 %v3246
    %3362 = vmatprep.subr.bf16.mxu0 %v3245
    %3363 = vmatpush1.bf16.msra.mxu0 %v3244
    %3364 = vmatprep.subr.bf16.mxu0 %v3243
    %3365 = vmatpush1.bf16.msra.mxu0 %v3242
    %3366 = vmatprep.subr.bf16.mxu0 %v3241
    %3367 = vmatpush1.bf16.msra.mxu0 %v3240
    %3368 = vmatprep.subr.bf16.mxu0 %v3239
    %3369 = vmatpush1.bf16.msra.mxu0 %v3238
    %3370 = vmatprep.subr.bf16.mxu0 %v3237
    %3371 = vmatpush1.bf16.msra.mxu0 %v3236
    %3372 = vmatprep.subr.bf16.mxu0 %v3235
    %3373 = vmatpush1.bf16.msra.mxu0 %v3234
    %3374 = vmatprep.subr.bf16.mxu0 %v3233
    %3375 = vmatpush1.bf16.msra.mxu0 %v3232
    %3376 = vmatprep.subr.bf16.mxu0 %v3263
    %3377 = vmatpush2.bf16.msra.mxu0 %v3262
    %3378 = vmatprep.subr.bf16.mxu0 %v3261
    %3379 = vmatpush2.bf16.msra.mxu0 %v3260
    %3380 = vmatprep.subr.bf16.mxu0 %v3259
    %3381 = vmatpush2.bf16.msra.mxu0 %v3258
    %3382 = vmatprep.subr.bf16.mxu0 %v3257
    %3383 = vmatpush2.bf16.msra.mxu0 %v3256
    %3384 = vmatprep.subr.bf16.mxu0 %v3255
    %3385 = vmatpush2.bf16.msra.mxu0 %v3254
    %3386 = vmatprep.subr.bf16.mxu0 %v3253
    %3387 = vmatpush2.bf16.msra.mxu0 %v3252
    %3388 = vmatprep.subr.bf16.mxu0 %v3251
    %3389 = vmatpush2.bf16.msra.mxu0 %v3250
    %3390 = vmatprep.subr.bf16.mxu0 %v3249
    %3391 = vmatpush2.bf16.msra.mxu0 %v3248
    %3392 = vmatprep.mubr.bf16.mxu0 %v2961
    %3393 = vmatmul.mubr.bf16.gmra.mxu0 %v2960
    %v3394 = vpop.f32.mrf.mxu0
    %v3395 = vadd.f32 %v3033, %v3394
    %v3396 = vpop.f32.mrf.mxu0
    %v3397 = vadd.f32 %v3037, %v3396
    %v3398 = vpop.f32.mrf.mxu0
    %v3399 = vpop.f32.mrf.mxu0
    %3400 = vdwg.mxu0
    %3401 = vmatprep.subr.bf16.mxu0 %v3279
    %3402 = vmatpush1.bf16.msra.mxu0 %v3278
    %3403 = vmatprep.subr.bf16.mxu0 %v3277
    %3404 = vmatpush1.bf16.msra.mxu0 %v3276
    %3405 = vmatprep.subr.bf16.mxu0 %v3275
    %3406 = vmatpush1.bf16.msra.mxu0 %v3274
    %3407 = vmatprep.subr.bf16.mxu0 %v3273
    %3408 = vmatpush1.bf16.msra.mxu0 %v3272
    %3409 = vmatprep.subr.bf16.mxu0 %v3271
    %3410 = vmatpush1.bf16.msra.mxu0 %v3270
    %3411 = vmatprep.subr.bf16.mxu0 %v3269
    %3412 = vmatpush1.bf16.msra.mxu0 %v3268
    %3413 = vmatprep.subr.bf16.mxu0 %v3267
    %3414 = vmatpush1.bf16.msra.mxu0 %v3266
    %3415 = vmatprep.subr.bf16.mxu0 %v3265
    %3416 = vmatpush1.bf16.msra.mxu0 %v3264
    %3417 = vmatprep.subr.bf16.mxu0 %v3295
    %3418 = vmatpush2.bf16.msra.mxu0 %v3294
    %3419 = vmatprep.subr.bf16.mxu0 %v3293
    %3420 = vmatpush2.bf16.msra.mxu0 %v3292
    %3421 = vmatprep.subr.bf16.mxu0 %v3291
    %3422 = vmatpush2.bf16.msra.mxu0 %v3290
    %3423 = vmatprep.subr.bf16.mxu0 %v3289
    %3424 = vmatpush2.bf16.msra.mxu0 %v3288
    %3425 = vmatprep.subr.bf16.mxu0 %v3287
    %3426 = vmatpush2.bf16.msra.mxu0 %v3286
    %3427 = vmatprep.subr.bf16.mxu0 %v3285
    %3428 = vmatpush2.bf16.msra.mxu0 %v3284
    %3429 = vmatprep.subr.bf16.mxu0 %v3283
    %3430 = vmatpush2.bf16.msra.mxu0 %v3282
    %3431 = vmatprep.subr.bf16.mxu0 %v3281
    %3432 = vmatpush2.bf16.msra.mxu0 %v3280
    %3433 = vmatprep.mubr.bf16.mxu0 %v2963
    %3434 = vmatmul.mubr.bf16.gmra.mxu0 %v2962
    %v3435 = vpop.f32.mrf.mxu0
    %v3436 = vadd.f32 %v3395, %v3435
    %v3437 = vpop.f32.mrf.mxu0
    %v3438 = vadd.f32 %v3397, %v3437
    %v3439 = vpop.f32.mrf.mxu0
    %v3440 = vpop.f32.mrf.mxu0
    %3441 = vdwg.mxu0
    %v3442 = vmax.f32 %v3436, 0.0
    %v3443 = vmax.f32 %v3438, 0.0
    %v3444 = vpack.c.bf16 %v3442, %v3442
    %v3445 = vpack.c.bf16 %v3443, %v3443
    %v3446 = vld [vmem:[#allocation10] sm:$0xf]
    %v3447 = vld [vmem:[#allocation10 + $0x4] sm:$0xf]
    %v3448 = vld [vmem:[#allocation10 + $0x8] sm:$0xf]
    %v3449 = vld [vmem:[#allocation10 + $0xc] sm:$0xf]
    %v3450 = vld [vmem:[#allocation10 + $0x10] sm:$0xf]
    %v3451 = vld [vmem:[#allocation10 + $0x14] sm:$0xf]
    %v3452 = vld [vmem:[#allocation10 + $0x18] sm:$0xf]
    %v3453 = vld [vmem:[#allocation10 + $0x1c] sm:$0xf]
    %v3454 = vld [vmem:[#allocation10 + $0x20] sm:$0xf]
    %v3455 = vld [vmem:[#allocation10 + $0x24] sm:$0xf]
    %v3456 = vld [vmem:[#allocation10 + $0x28] sm:$0xf]
    %v3457 = vld [vmem:[#allocation10 + $0x2c] sm:$0xf]
    %v3458 = vld [vmem:[#allocation10 + $0x30] sm:$0xf]
    %v3459 = vld [vmem:[#allocation10 + $0x34] sm:$0xf]
    %v3460 = vld [vmem:[#allocation10 + $0x38] sm:$0xf]
    %v3461 = vld [vmem:[#allocation10 + $0x3c] sm:$0xf]
    %v3462 = vld [vmem:[#allocation10 + $0x40] sm:$0xf]
    %v3463 = vld [vmem:[#allocation10 + $0x44] sm:$0xf]
    %v3464 = vld [vmem:[#allocation10 + $0x48] sm:$0xf]
    %v3465 = vld [vmem:[#allocation10 + $0x4c] sm:$0xf]
    %v3466 = vld [vmem:[#allocation10 + $0x50] sm:$0xf]
    %v3467 = vld [vmem:[#allocation10 + $0x54] sm:$0xf]
    %v3468 = vld [vmem:[#allocation10 + $0x58] sm:$0xf]
    %v3469 = vld [vmem:[#allocation10 + $0x5c] sm:$0xf]
    %v3470 = vld [vmem:[#allocation10 + $0x60] sm:$0xf]
    %v3471 = vld [vmem:[#allocation10 + $0x64] sm:$0xf]
    %v3472 = vld [vmem:[#allocation10 + $0x68] sm:$0xf]
    %v3473 = vld [vmem:[#allocation10 + $0x6c] sm:$0xf]
    %v3474 = vld [vmem:[#allocation10 + $0x70] sm:$0xf]
    %v3475 = vld [vmem:[#allocation10 + $0x74] sm:$0xf]
    %v3476 = vld [vmem:[#allocation10 + $0x78] sm:$0xf]
    %v3477 = vld [vmem:[#allocation10 + $0x7c] sm:$0xf]
    %v3478 = vld [vmem:[#allocation12] sm:$0x1]
    %v3480 = vlaneseq
    %v3481 = vshrl.u32 %v3480, 7
    %v3482 = vsub.s32 0, %v3481
    %v3483 = vrot.slane %v3478, %v3482
    %v3517 = vunpack.c.l.b16 %v3446
    %v3518 = vunpack.c.l.b16 %v3447
    %v3519 = vunpack.c.l.b16 %v3448
    %v3520 = vunpack.c.l.b16 %v3449
    %v3521 = vunpack.c.l.b16 %v3450
    %v3522 = vunpack.c.l.b16 %v3451
    %v3523 = vunpack.c.l.b16 %v3452
    %v3524 = vunpack.c.l.b16 %v3453
    %v3525 = vunpack.c.l.b16 %v3454
    %v3526 = vunpack.c.l.b16 %v3455
    %v3527 = vunpack.c.l.b16 %v3456
    %v3528 = vunpack.c.l.b16 %v3457
    %v3529 = vunpack.c.l.b16 %v3458
    %v3530 = vunpack.c.l.b16 %v3459
    %v3531 = vunpack.c.l.b16 %v3460
    %v3532 = vunpack.c.l.b16 %v3461
    %v3533 = vunpack.c.l.b16 %v3462
    %v3534 = vunpack.c.l.b16 %v3463
    %v3535 = vunpack.c.l.b16 %v3464
    %v3536 = vunpack.c.l.b16 %v3465
    %v3537 = vunpack.c.l.b16 %v3466
    %v3538 = vunpack.c.l.b16 %v3467
    %v3539 = vunpack.c.l.b16 %v3468
    %v3540 = vunpack.c.l.b16 %v3469
    %v3541 = vunpack.c.l.b16 %v3470
    %v3542 = vunpack.c.l.b16 %v3471
    %v3543 = vunpack.c.l.b16 %v3472
    %v3544 = vunpack.c.l.b16 %v3473
    %v3545 = vunpack.c.l.b16 %v3474
    %v3546 = vunpack.c.l.b16 %v3475
    %v3547 = vunpack.c.l.b16 %v3476
    %v3548 = vunpack.c.l.b16 %v3477
    %v3549 = vpack.c.b16 %v3518, %v3517
    %v3550 = vpack.c.b16 %v3520, %v3519
    %v3551 = vpack.c.b16 %v3522, %v3521
    %v3552 = vpack.c.b16 %v3524, %v3523
    %v3553 = vpack.c.b16 %v3526, %v3525
    %v3554 = vpack.c.b16 %v3528, %v3527
    %v3555 = vpack.c.b16 %v3530, %v3529
    %v3556 = vpack.c.b16 %v3532, %v3531
    %v3557 = vpack.c.b16 %v3534, %v3533
    %v3558 = vpack.c.b16 %v3536, %v3535
    %v3559 = vpack.c.b16 %v3538, %v3537
    %v3560 = vpack.c.b16 %v3540, %v3539
    %v3561 = vpack.c.b16 %v3542, %v3541
    %v3562 = vpack.c.b16 %v3544, %v3543
    %v3563 = vpack.c.b16 %v3546, %v3545
    %v3564 = vpack.c.b16 %v3548, %v3547
    %3581 = vmatprep.subr.bf16.mxu0 0
    %3582 = vmatpush1.bf16.msra.mxu0 %v3556
    %3583 = vmatprep.subr.bf16.mxu0 0
    %3584 = vmatpush1.bf16.msra.mxu0 %v3555
    %3585 = vmatprep.subr.bf16.mxu0 0
    %3586 = vmatpush1.bf16.msra.mxu0 %v3554
    %3587 = vmatprep.subr.bf16.mxu0 0
    %3588 = vmatpush1.bf16.msra.mxu0 %v3553
    %3589 = vmatprep.subr.bf16.mxu0 0
    %3590 = vmatpush1.bf16.msra.mxu0 %v3552
    %3591 = vmatprep.subr.bf16.mxu0 0
    %3592 = vmatpush1.bf16.msra.mxu0 %v3551
    %3593 = vmatprep.subr.bf16.mxu0 0
    %3594 = vmatpush1.bf16.msra.mxu0 %v3550
    %3595 = vmatprep.subr.bf16.mxu0 0
    %3596 = vmatpush1.bf16.msra.mxu0 %v3549
    %3597 = vmatprep.subr.bf16.mxu0 0
    %3598 = vmatpush2.bf16.msra.mxu0 %v3564
    %3599 = vmatprep.subr.bf16.mxu0 0
    %3600 = vmatpush2.bf16.msra.mxu0 %v3563
    %3601 = vmatprep.subr.bf16.mxu0 0
    %3602 = vmatpush2.bf16.msra.mxu0 %v3562
    %3603 = vmatprep.subr.bf16.mxu0 0
    %3604 = vmatpush2.bf16.msra.mxu0 %v3561
    %3605 = vmatprep.subr.bf16.mxu0 0
    %3606 = vmatpush2.bf16.msra.mxu0 %v3560
    %3607 = vmatprep.subr.bf16.mxu0 0
    %3608 = vmatpush2.bf16.msra.mxu0 %v3559
    %3609 = vmatprep.subr.bf16.mxu0 0
    %3610 = vmatpush2.bf16.msra.mxu0 %v3558
    %3611 = vmatprep.subr.bf16.mxu0 0
    %3612 = vmatpush2.bf16.msra.mxu0 %v3557
    %3613 = vmatprep.mubr.bf16.mxu0 %v3445
    %3614 = vmatmul.mubr.bf16.gmra.mxu0 %v3444
    %v3615 = vpop.f32.mrf.mxu0
    %v3616 = vadd.f32 %v3483, %v3615
    %v3617 = vpop.f32.mrf.mxu0
    %v3618 = vpop.f32.mrf.mxu0
    %v3619 = vpop.f32.mrf.mxu0
    %3620 = vdwg.mxu0
    %v3621 = vxor.u32 %v3616, 2147483648
    %v3622 = vmul.f32 %v3621, 1.442695
    %v3623 = vpow.pop %v3622
    %v3624 = vadd.f32 %v3623, 1.0
    %v3625 = vrcp.pop %v3624
    %v3626 = vmul.f32 1.0, %v3625
    %3627 = vst [vmem:[%s7] sm:$0xff] %v3626
    // Predicated region
    $region58: #{mlp_forward.1} parent=1 // pred_check
      _
    $region59: #{mlp_forward.1} parent=1 // pred_check_branch
      %3629 = sbr.rel (0) target = $region61
    $region60: #{mlp_forward.1} parent=1 // pred_region
      _
    $region61: #{mlp_forward.1} parent=1 // pred_fallthru
      _
    // Predicated region
    $region62: #{mlp_forward.1} parent=1 // pred_check
      _
    $region63: #{mlp_forward.1} parent=1 // pred_check_branch
      %3631 = sbr.rel (0) target = $region65
    $region64: #{mlp_forward.1} parent=1 // pred_region
      _
    $region65: #{mlp_forward.1} parent=1 // pred_fallthru
      _
    %3632 = vsyncpa [#allocation3], 1
    %3633 = vsyncpa [#allocation5], 1
    %3634 = vsyncpa [#allocation8], 1
    %3635 = vsyncpa [#allocation11], 1

</llo_original>
